<compile_context>
chip_gen: v7x
topology: tpu7x:2x2x1
jax: 0.10.0
libtpu: 0.0.40
codegen_flags: <defaults>
</compile_context>

<pallas_src>
import functools

import jax
import jax.numpy as jnp
from jax.experimental import pallas as pl
from jax.experimental.pallas import tpu as pltpu

EMBED_DIM = 32
HIDDEN_DIM = 32
NUM_HEADS = 4
D_HEAD = HIDDEN_DIM // NUM_HEADS


def _round_up(x, m):
    return ((x + m - 1) // m) * m


def _attention_predictor_kernel(src_ref, dst_ref,
                                w_enc_ref, b_enc_ref,   # [2D, 2H], [1, 2H]  (block-diag src|dst encoder)
                                w_qkv_ref,              # [2H, 3H]           (block-diag Q | K|V)
                                sel_ref, selt_ref,      # [H, nh], [nh, H]   (constant head selectors)
                                w2_ref, b2_ref,         # [H, H],  [1, H]
                                w3p_ref, b3_ref,        # [8, H],  [1, 1]
                                o_ref):
    """Hot path: all matmuls / softmax / elementwise for one tile of edges."""
    f32 = jnp.float32
    # bf16 in HBM (halves input traffic); widen to f32 for VPU/EUP work (v5e-safe).
    src = src_ref[...].astype(f32)
    dst = dst_ref[...].astype(f32)

    # Fused per-edge encoders: [src | dst] @ blockdiag(w1s, w1d) + [b1s | b1d], ReLU.
    x = jnp.concatenate([src, dst], axis=1)                                   # [TE, 2D]
    h = jnp.maximum(
        jnp.dot(x, w_enc_ref[...], preferred_element_type=f32) + b_enc_ref[...], 0.0)  # [TE, 2H]

    # Fused Q / K|V projection: [h_src | h_dst] @ blockdiag(wq, wk|wv) -> [q | k | v].
    qkv = jnp.dot(h, w_qkv_ref[...], preferred_element_type=f32)              # [TE, 3H]
    H = qkv.shape[1] // 3
    q = qkv[:, :H]
    k = qkv[:, H:2 * H]
    v = qkv[:, 2 * H:]

    # Per-head scaled dot-product logits via the (pre-scaled) constant head selector.
    logits = jnp.dot(q * k, sel_ref[...], preferred_element_type=f32)         # [TE, nh]

    # Softmax over heads (EUP exp + approx reciprocal).
    m = jnp.max(logits, axis=-1, keepdims=True)
    e = jnp.exp(logits - m)
    w = e * pl.reciprocal(jnp.sum(e, axis=-1, keepdims=True), approx=True)    # [TE, nh]

    # Broadcast per-head weights back over their d_head columns and gate V.
    ctx = v * jnp.dot(w, selt_ref[...], preferred_element_type=f32)           # [TE, H]

    # Output MLP: Linear + ReLU, then final projection as a transposed-RHS matmul so the
    # result is already lane-dense: [8, H] x [TE, H]^T -> [8, TE], row 0 is the score.
    pre = jnp.maximum(
        jnp.dot(ctx, w2_ref[...], preferred_element_type=f32) + b2_ref[...], 0.0)  # [TE, H]
    score8 = jax.lax.dot_general(w3p_ref[...], pre,
                                 (((1,), (1,)), ((), ())),
                                 preferred_element_type=f32)                        # [8, TE]
    score_row = score8[0:1, :] + b3_ref[...]                                        # [1, TE]
    o_ref[0] = score_row.astype(o_ref.dtype)


def init_params(key, embed_dim=EMBED_DIM, hidden_dim=HIDDEN_DIM):
    """Deterministic synthetic parameters for the attention-predictor head."""
    ks = jax.random.split(key, 8)

    def lin(k, din, dout):
        scale = 1.0 / jnp.sqrt(jnp.float32(din))
        return jax.random.uniform(k, (din, dout), jnp.float32, -scale, scale)

    return {
        "w1s": lin(ks[0], embed_dim, hidden_dim), "b1s": jnp.zeros((1, hidden_dim), jnp.float32),
        "w1d": lin(ks[1], embed_dim, hidden_dim), "b1d": jnp.zeros((1, hidden_dim), jnp.float32),
        "wq": lin(ks[2], hidden_dim, hidden_dim),
        "wk": lin(ks[3], hidden_dim, hidden_dim),
        "wv": lin(ks[4], hidden_dim, hidden_dim),
        "w2": lin(ks[5], hidden_dim, hidden_dim), "b2": jnp.zeros((1, hidden_dim), jnp.float32),
        "w3": lin(ks[6], hidden_dim, 1), "b3": jnp.zeros((1, 1), jnp.float32),
    }


@functools.partial(jax.jit, static_argnames=("tile_edges",))
def autoregressive_link_predictor_forward(src_embeddings, dst_embeddings, params,
                                          edge_attr=None, *, tile_edges=2048):
    """Mirrors AutoregressiveLinkPredictor.forward: per-edge attention link scores [num_edges].

    tile_edges is the main tuning knob (HBM-bound kernel; bigger tiles amortize per-step
    overhead).  On v7x pick tile_edges <= E // 2 so the grid stays >= 2 and the 'parallel'
    axis can shard across both TensorCores; VMEM use here is ~1 MiB at the default tile so
    the default scoped VMEM limit is ample on all generations (raise vmem_limit_bytes only
    for >=32K tiles).
    """
    del edge_attr  # TODO(synk): edge_attr path unspecified in source; unused.
    E, D = src_embeddings.shape
    H = params["w1s"].shape[1]
    nh = NUM_HEADS
    dh = H // nh

    # Tile selection + padding (arbitrary edge counts supported).  Tiles are multiples of 128
    # so the lane-major score row stores are full-width and input sublane counts stay aligned.
    tile = min(tile_edges, _round_up(E, 128))
    tile = max(128, (tile // 128) * 128)
    E_pad = _round_up(E, tile)
    n_tiles = E_pad // tile

    # bf16 edge embeddings (no-op if caller already passes bf16).
    src = src_embeddings.astype(jnp.bfloat16)
    dst = dst_embeddings.astype(jnp.bfloat16)
    if E_pad != E:
        pad = E_pad - E
        src = jnp.pad(src, ((0, pad), (0, 0)))
        dst = jnp.pad(dst, ((0, pad), (0, 0)))

    # Constant head selectors (hoisted out of the kernel), Q-scale folded into sel.
    col_head = jnp.arange(H, dtype=jnp.int32) // dh
    head_ids = jnp.arange(nh, dtype=jnp.int32)
    sel = (col_head[:, None] == head_ids[None, :]).astype(jnp.float32)       # [H, nh]
    sel_scaled = sel / jnp.sqrt(jnp.float32(dh))
    sel_t = sel.T                                                            # [nh, H]

    # Fused block-diagonal weights (built once, resident across the grid).
    w_enc = (jnp.zeros((2 * D, 2 * H), jnp.float32)
             .at[:D, :H].set(params["w1s"])
             .at[D:, H:].set(params["w1d"]))                                 # [2D, 2H]
    b_enc = jnp.concatenate([params["b1s"], params["b1d"]], axis=1)          # [1, 2H]
    wkv = jnp.concatenate([params["wk"], params["wv"]], axis=1)              # [H, 2H]
    w_qkv = (jnp.zeros((2 * H, 3 * H), jnp.float32)
             .at[:H, :H].set(params["wq"])
             .at[H:, H:].set(wkv))                                           # [2H, 3H]
    w3_pad = jnp.pad(params["w3"].T, ((0, 7), (0, 0)))                       # [8, H] (row 0 = w3^T)

    full = lambda i: (0, 0)
    edge_spec = pl.BlockSpec((tile, D), lambda i: (i, 0))

    out = pl.pallas_call(
        _attention_predictor_kernel,
        out_shape=jax.ShapeDtypeStruct((n_tiles, 1, tile), jnp.float32),
        grid=(n_tiles,),
        in_specs=[
            edge_spec, edge_spec,
            pl.BlockSpec((2 * D, 2 * H), full), pl.BlockSpec((1, 2 * H), full),   # w_enc, b_enc
            pl.BlockSpec((2 * H, 3 * H), full),                                   # w_qkv
            pl.BlockSpec((H, nh), full), pl.BlockSpec((nh, H), full),             # sel_scaled, sel_t
            pl.BlockSpec((H, H), full), pl.BlockSpec((1, H), full),               # w2, b2
            pl.BlockSpec((8, H), full), pl.BlockSpec((1, 1), full),               # w3_pad, b3
        ],
        out_specs=pl.BlockSpec((1, 1, tile), lambda i: (i, 0, 0)),
        compiler_params=pltpu.CompilerParams(dimension_semantics=("parallel",)),
    )(src, dst,
      w_enc, b_enc, w_qkv, sel_scaled, sel_t,
      params["w2"], params["b2"], w3_pad, params["b3"])

    return out.reshape(E_pad)[:E]  # [num_edges]


def _reference_forward(src, dst, p):
    """Pure-JAX reference for correctness checking (same bf16 inputs, f32 math)."""
    src = src.astype(jnp.float32)
    dst = dst.astype(jnp.float32)
    h_src = jnp.maximum(src @ p["w1s"] + p["b1s"], 0.0)
    h_dst = jnp.maximum(dst @ p["w1d"] + p["b1d"], 0.0)
    q, k, v = h_src @ p["wq"], h_dst @ p["wk"], h_dst @ p["wv"]
    E = src.shape[0]
    qh = q.reshape(E, NUM_HEADS, D_HEAD)
    kh = k.reshape(E, NUM_HEADS, D_HEAD)
    vh = v.reshape(E, NUM_HEADS, D_HEAD)
    logits = jnp.sum(qh * kh, axis=-1) / jnp.sqrt(jnp.float32(D_HEAD))   # [E, nh]
    w = jax.nn.softmax(logits, axis=-1)
    ctx = (w[:, :, None] * vh).reshape(E, HIDDEN_DIM)
    pre = jnp.maximum(ctx @ p["w2"] + p["b2"], 0.0)
    return (pre @ p["w3"] + p["b3"])[:, 0]


if __name__ == "__main__":
    key = jax.random.PRNGKey(0)
    k_src, k_dst, k_params = jax.random.split(key, 3)

    num_edges = 200  # deliberately not a tile multiple -> exercises the padding path
    src = jax.random.normal(k_src, (num_edges, EMBED_DIM), jnp.float32).astype(jnp.bfloat16)
    dst = jax.random.normal(k_dst, (num_edges, EMBED_DIM), jnp.float32).astype(jnp.bfloat16)
    params = init_params(k_params)

    scores = autoregressive_link_predictor_forward(src, dst, params)
    scores = jax.block_until_ready(scores)

    ref = _reference_forward(src, dst, params)
    assert scores.shape == (num_edges,)
    max_err = jnp.max(jnp.abs(scores - ref))
    assert jnp.allclose(scores, ref, atol=5e-3, rtol=5e-3), f"mismatch vs reference (max abs err {max_err})"

    print("KERNEL_OK")
</pallas_src>

<mosaic_0001>
module attributes {stable_mosaic.version = 11 : i64} {
  func.func @_attention_predictor_kernel(%arg0: i32, %arg1: memref<256x32xbf16, #tpu.memory_space<vmem>>, %arg2: memref<256x32xbf16, #tpu.memory_space<vmem>>, %arg3: memref<64x64xf32, #tpu.memory_space<vmem>>, %arg4: memref<1x64xf32, #tpu.memory_space<vmem>>, %arg5: memref<64x96xf32, #tpu.memory_space<vmem>>, %arg6: memref<32x4xf32, #tpu.memory_space<vmem>>, %arg7: memref<4x32xf32, #tpu.memory_space<vmem>>, %arg8: memref<32x32xf32, #tpu.memory_space<vmem>>, %arg9: memref<1x32xf32, #tpu.memory_space<vmem>>, %arg10: memref<8x32xf32, #tpu.memory_space<vmem>>, %arg11: memref<1x1xf32, #tpu.memory_space<vmem>>, %arg12: memref<1x1x256xf32, #tpu.memory_space<vmem>>) attributes {dimension_semantics = [#tpu.dimension_semantics<parallel>], iteration_bounds = array<i64: 1>, scalar_prefetch = 0 : i64, scratch_operands = 0 : i64, tpu.core_type = #tpu.core_type<tc>, window_params = [{transform_indices = @transform_0, window_bounds = array<i64: 256, 32>}, {transform_indices = @transform_1, window_bounds = array<i64: 256, 32>}, {pipeline_mode = #tpu.pipeline_mode<synchronous>, transform_indices = @transform_2, window_bounds = array<i64: 64, 64>}, {pipeline_mode = #tpu.pipeline_mode<synchronous>, transform_indices = @transform_3, window_bounds = array<i64: 1, 64>}, {pipeline_mode = #tpu.pipeline_mode<synchronous>, transform_indices = @transform_4, window_bounds = array<i64: 64, 96>}, {pipeline_mode = #tpu.pipeline_mode<synchronous>, transform_indices = @transform_5, window_bounds = array<i64: 32, 4>}, {pipeline_mode = #tpu.pipeline_mode<synchronous>, transform_indices = @transform_6, window_bounds = array<i64: 4, 32>}, {pipeline_mode = #tpu.pipeline_mode<synchronous>, transform_indices = @transform_7, window_bounds = array<i64: 32, 32>}, {pipeline_mode = #tpu.pipeline_mode<synchronous>, transform_indices = @transform_8, window_bounds = array<i64: 1, 32>}, {pipeline_mode = #tpu.pipeline_mode<synchronous>, transform_indices = @transform_9, window_bounds = array<i64: 8, 32>}, {pipeline_mode = #tpu.pipeline_mode<synchronous>, transform_indices = @transform_10, window_bounds = array<i64: 1, 1>}, {transform_indices = @transform_11, window_bounds = array<i64: 1, 1, 256>}]} {
    %c0 = arith.constant 0 : index
    %c0_0 = arith.constant 0 : index
    %0 = vector.load %arg1[%c0, %c0_0] : memref<256x32xbf16, #tpu.memory_space<vmem>>, vector<256x32xbf16>
    %1 = arith.extf %0 : vector<256x32xbf16> to vector<256x32xf32>
    %c0_1 = arith.constant 0 : index
    %c0_2 = arith.constant 0 : index
    %2 = vector.load %arg2[%c0_1, %c0_2] : memref<256x32xbf16, #tpu.memory_space<vmem>>, vector<256x32xbf16>
    %3 = arith.extf %2 : vector<256x32xbf16> to vector<256x32xf32>
    %4 = tpu.concatenate %1, %3 in 1 : vector<256x32xf32>, vector<256x32xf32> -> vector<256x64xf32>
    %c0_3 = arith.constant 0 : index
    %c0_4 = arith.constant 0 : index
    %5 = vector.load %arg3[%c0_3, %c0_4] : memref<64x64xf32, #tpu.memory_space<vmem>>, vector<64x64xf32>
    %cst = arith.constant dense<0.000000e+00> : vector<256x64xf32>
    %6 = tpu.matmul %4, %5, %cst {dimension_numbers = #tpu.dot_dimension_numbers<[1], [0], [0], [1], [0, 0, 1, 1], [], []>} : vector<256x64xf32>, vector<64x64xf32>, vector<256x64xf32> -> vector<256x64xf32>
    %c0_5 = arith.constant 0 : index
    %c0_6 = arith.constant 0 : index
    %7 = vector.load %arg4[%c0_5, %c0_6] : memref<1x64xf32, #tpu.memory_space<vmem>>, vector<1x64xf32>
    %8 = vector.broadcast %7 : vector<1x64xf32> to vector<256x64xf32>
    %9 = arith.addf %6, %8 : vector<256x64xf32>
    %cst_7 = arith.constant 0.000000e+00 : f32
    %10 = vector.broadcast %cst_7 : f32 to vector<256x64xf32>
    %11 = arith.maximumf %9, %10 : vector<256x64xf32>
    %c0_8 = arith.constant 0 : index
    %c0_9 = arith.constant 0 : index
    %12 = vector.load %arg5[%c0_8, %c0_9] : memref<64x96xf32, #tpu.memory_space<vmem>>, vector<64x96xf32>
    %cst_10 = arith.constant dense<0.000000e+00> : vector<256x96xf32>
    %13 = tpu.matmul %11, %12, %cst_10 {dimension_numbers = #tpu.dot_dimension_numbers<[1], [0], [0], [1], [0, 0, 1, 1], [], []>} : vector<256x64xf32>, vector<64x96xf32>, vector<256x96xf32> -> vector<256x96xf32>
    %14 = vector.extract_strided_slice %13 {offsets = [0, 0], sizes = [256, 32], strides = [1, 1]} : vector<256x96xf32> to vector<256x32xf32>
    %15 = vector.extract_strided_slice %13 {offsets = [0, 32], sizes = [256, 32], strides = [1, 1]} : vector<256x96xf32> to vector<256x32xf32>
    %16 = vector.extract_strided_slice %13 {offsets = [0, 64], sizes = [256, 32], strides = [1, 1]} : vector<256x96xf32> to vector<256x32xf32>
    %17 = arith.mulf %14, %15 : vector<256x32xf32>
    %c0_11 = arith.constant 0 : index
    %c0_12 = arith.constant 0 : index
    %18 = vector.load %arg6[%c0_11, %c0_12] : memref<32x4xf32, #tpu.memory_space<vmem>>, vector<32x4xf32>
    %cst_13 = arith.constant dense<0.000000e+00> : vector<256x4xf32>
    %19 = tpu.matmul %17, %18, %cst_13 {dimension_numbers = #tpu.dot_dimension_numbers<[1], [0], [0], [1], [0, 0, 1, 1], [], []>} : vector<256x32xf32>, vector<32x4xf32>, vector<256x4xf32> -> vector<256x4xf32>
    %cst_14 = arith.constant dense<0xFF800000> : vector<256xf32>
    %20 = vector.multi_reduction <maximumf>, %19, %cst_14 [1] : vector<256x4xf32> to vector<256xf32>
    %21 = vector.shape_cast %20 : vector<256xf32> to vector<256x1xf32>
    %22 = vector.broadcast %21 : vector<256x1xf32> to vector<256x4xf32>
    %23 = arith.subf %19, %22 : vector<256x4xf32>
    %24 = math.exp %23 : vector<256x4xf32>
    %cst_15 = arith.constant dense<0.000000e+00> : vector<256xf32>
    %25 = vector.multi_reduction <add>, %24, %cst_15 [1] : vector<256x4xf32> to vector<256xf32>
    %26 = vector.shape_cast %25 : vector<256xf32> to vector<256x1xf32>
    %27 = tpu.reciprocal %26 {approx = true} : vector<256x1xf32> -> vector<256x1xf32>
    %28 = vector.broadcast %27 : vector<256x1xf32> to vector<256x4xf32>
    %29 = arith.mulf %24, %28 : vector<256x4xf32>
    %c0_16 = arith.constant 0 : index
    %c0_17 = arith.constant 0 : index
    %30 = vector.load %arg7[%c0_16, %c0_17] : memref<4x32xf32, #tpu.memory_space<vmem>>, vector<4x32xf32>
    %cst_18 = arith.constant dense<0.000000e+00> : vector<256x32xf32>
    %31 = tpu.matmul %29, %30, %cst_18 {dimension_numbers = #tpu.dot_dimension_numbers<[1], [0], [0], [1], [0, 0, 1, 1], [], []>} : vector<256x4xf32>, vector<4x32xf32>, vector<256x32xf32> -> vector<256x32xf32>
    %32 = arith.mulf %16, %31 : vector<256x32xf32>
    %c0_19 = arith.constant 0 : index
    %c0_20 = arith.constant 0 : index
    %33 = vector.load %arg8[%c0_19, %c0_20] : memref<32x32xf32, #tpu.memory_space<vmem>>, vector<32x32xf32>
    %cst_21 = arith.constant dense<0.000000e+00> : vector<256x32xf32>
    %34 = tpu.matmul %32, %33, %cst_21 {dimension_numbers = #tpu.dot_dimension_numbers<[1], [0], [0], [1], [0, 0, 1, 1], [], []>} : vector<256x32xf32>, vector<32x32xf32>, vector<256x32xf32> -> vector<256x32xf32>
    %c0_22 = arith.constant 0 : index
    %c0_23 = arith.constant 0 : index
    %35 = vector.load %arg9[%c0_22, %c0_23] : memref<1x32xf32, #tpu.memory_space<vmem>>, vector<1x32xf32>
    %36 = vector.broadcast %35 : vector<1x32xf32> to vector<256x32xf32>
    %37 = arith.addf %34, %36 : vector<256x32xf32>
    %cst_24 = arith.constant 0.000000e+00 : f32
    %38 = vector.broadcast %cst_24 : f32 to vector<256x32xf32>
    %39 = arith.maximumf %37, %38 : vector<256x32xf32>
    %c0_25 = arith.constant 0 : index
    %c0_26 = arith.constant 0 : index
    %40 = vector.load %arg10[%c0_25, %c0_26] : memref<8x32xf32, #tpu.memory_space<vmem>>, vector<8x32xf32>
    %cst_27 = arith.constant dense<0.000000e+00> : vector<8x256xf32>
    %41 = tpu.matmul %40, %39, %cst_27 {dimension_numbers = #tpu.dot_dimension_numbers<[1], [1], [0], [0], [0, 0, 1, 0], [], []>} : vector<8x32xf32>, vector<256x32xf32>, vector<8x256xf32> -> vector<8x256xf32>
    %42 = vector.extract_strided_slice %41 {offsets = [0, 0], sizes = [1, 256], strides = [1, 1]} : vector<8x256xf32> to vector<1x256xf32>
    %c0_28 = arith.constant 0 : index
    %c0_29 = arith.constant 0 : index
    %43 = vector.load %arg11[%c0_28, %c0_29] : memref<1x1xf32, #tpu.memory_space<vmem>>, vector<1x1xf32>
    %44 = vector.broadcast %43 : vector<1x1xf32> to vector<1x256xf32>
    %45 = arith.addf %42, %44 : vector<1x256xf32>
    %c0_30 = arith.constant 0 : index
    %c0_31 = arith.constant 0 : index
    %c0_32 = arith.constant 0 : index
    %46 = vector.load %arg12[%c0_30, %c0_31, %c0_32] : memref<1x1x256xf32, #tpu.memory_space<vmem>>, vector<1x1x256xf32>
    %47 = vector.shape_cast %46 : vector<1x1x256xf32> to vector<1x256xf32>
    %48 = vector.shape_cast %45 : vector<1x256xf32> to vector<1x1x256xf32>
    tpu.vector_store %arg12[%c0_30, %c0_31, %c0_32], %48 {strides = array<i32>} : memref<1x1x256xf32, #tpu.memory_space<vmem>>, vector<1x1x256xf32>,
    return
  }
  func.func @transform_0(%arg0: i32) -> (i32, i32) {
    %c0_i32 = arith.constant 0 : i32
    %c0_i32_0 = arith.constant 0 : i32
    return %arg0, %c0_i32 : i32, i32
  }
  func.func @transform_1(%arg0: i32) -> (i32, i32) {
    %c0_i32 = arith.constant 0 : i32
    %c0_i32_0 = arith.constant 0 : i32
    return %arg0, %c0_i32 : i32, i32
  }
  func.func @transform_2(%arg0: i32) -> (i32, i32) {
    %c0_i32 = arith.constant 0 : i32
    %c0_i32_0 = arith.constant 0 : i32
    %c0_i32_1 = arith.constant 0 : i32
    return %c0_i32, %c0_i32_0 : i32, i32
  }
  func.func @transform_3(%arg0: i32) -> (i32, i32) {
    %c0_i32 = arith.constant 0 : i32
    %c0_i32_0 = arith.constant 0 : i32
    %c0_i32_1 = arith.constant 0 : i32
    return %c0_i32, %c0_i32_0 : i32, i32
  }
  func.func @transform_4(%arg0: i32) -> (i32, i32) {
    %c0_i32 = arith.constant 0 : i32
    %c0_i32_0 = arith.constant 0 : i32
    %c0_i32_1 = arith.constant 0 : i32
    return %c0_i32, %c0_i32_0 : i32, i32
  }
  func.func @transform_5(%arg0: i32) -> (i32, i32) {
    %c0_i32 = arith.constant 0 : i32
    %c0_i32_0 = arith.constant 0 : i32
    %c0_i32_1 = arith.constant 0 : i32
    return %c0_i32, %c0_i32_0 : i32, i32
  }
  func.func @transform_6(%arg0: i32) -> (i32, i32) {
    %c0_i32 = arith.constant 0 : i32
    %c0_i32_0 = arith.constant 0 : i32
    %c0_i32_1 = arith.constant 0 : i32
    return %c0_i32, %c0_i32_0 : i32, i32
  }
  func.func @transform_7(%arg0: i32) -> (i32, i32) {
    %c0_i32 = arith.constant 0 : i32
    %c0_i32_0 = arith.constant 0 : i32
    %c0_i32_1 = arith.constant 0 : i32
    return %c0_i32, %c0_i32_0 : i32, i32
  }
  func.func @transform_8(%arg0: i32) -> (i32, i32) {
    %c0_i32 = arith.constant 0 : i32
    %c0_i32_0 = arith.constant 0 : i32
    %c0_i32_1 = arith.constant 0 : i32
    return %c0_i32, %c0_i32_0 : i32, i32
  }
  func.func @transform_9(%arg0: i32) -> (i32, i32) {
    %c0_i32 = arith.constant 0 : i32
    %c0_i32_0 = arith.constant 0 : i32
    %c0_i32_1 = arith.constant 0 : i32
    return %c0_i32, %c0_i32_0 : i32, i32
  }
  func.func @transform_10(%arg0: i32) -> (i32, i32) {
    %c0_i32 = arith.constant 0 : i32
    %c0_i32_0 = arith.constant 0 : i32
    %c0_i32_1 = arith.constant 0 : i32
    return %c0_i32, %c0_i32_0 : i32, i32
  }
  func.func @transform_11(%arg0: i32) -> (i32, i32, i32) {
    %c0_i32 = arith.constant 0 : i32
    %c0_i32_0 = arith.constant 0 : i32
    %c0_i32_1 = arith.constant 0 : i32
    return %arg0, %c0_i32, %c0_i32_0 : i32, i32, i32
  }
}

</mosaic_0001>

<llo_original>
// kernel: autoregressive_link_predictor_forward.1
$region0: #{autoregressive_link_predictor_forward.1}
  #allocation0 [shape = 'u32[]', space=smem, size = 0x4, offset = 0x4, fixed_abs, tag = 'smem constant byte address 0x4 - core index']
  #allocation1 [shape = 'u32[144,128]{1,0:T(1,128)}', space=vmem, size = 0x12000, scoped, tag = 'internal scratch']
  #allocation2 [shape = 'f32[1,1]{1,0:T(1,128)S(1)}', space=vmem, size = 0x200, scoped, tag = 'scoped memory for autoregressive_link_predictor_forward.1']
  %s0 = inlined_call_operand.vmem [shape: bf16[256,32], index: 0, kind: input, shape index: {}]
  %s1 = inlined_call_operand.vmem [shape: bf16[256,32], index: 1, kind: input, shape index: {}]
  %s2 = inlined_call_operand.vmem [shape: f32[64,64], index: 2, kind: input, shape index: {}]
  %s3 = inlined_call_operand.vmem [shape: f32[1,64], index: 3, kind: input, shape index: {}]
  %s4 = inlined_call_operand.vmem [shape: f32[64,96], index: 4, kind: input, shape index: {}]
  %s5 = inlined_call_operand.vmem [shape: f32[32,4], index: 5, kind: input, shape index: {}]
  %s6 = inlined_call_operand.vmem [shape: f32[4,32], index: 6, kind: input, shape index: {}]
  %s7 = inlined_call_operand.vmem [shape: f32[32,32], index: 7, kind: input, shape index: {}]
  %s8 = inlined_call_operand.vmem [shape: f32[1,32], index: 8, kind: input, shape index: {}]
  %s9 = inlined_call_operand.vmem [shape: f32[8,32], index: 9, kind: input, shape index: {}]
  %s10 = inlined_call_operand.<no memory space> [shape: f32[1,1], index: 10, kind: input, shape index: {}]
  %s11 = inlined_call_operand.hbm [shape: f32[1,1,256], index: 11, kind: output, shape index: {}]
  %s12 = sld [smem:[#allocation0]]
  $region54: #{autoregressive_link_predictor_forward.1} parent=0
    _
  %s14 = ssub.s32 1, %s12
  %s15 = scalar_select 0, %s14, %s12
  %v16 = vstv %s10
  %17 = vst [vmem:[#allocation2] sm:$0x1] %v16
  $region1: #{autoregressive_link_predictor_forward.1} parent=0
    #allocation3 [shape = 'u8[1024]{0}', space=vmem, size = 0x400, scoped, tag = 'output window, operand 0, single buffered']
    #allocation4 [shape = 's32[1]{0}', space=sflag, size = 0x4, scoped, tag = 'scoped memory for autoregressive_link_predictor_forward.1']
    %18 = vsyncpa [#allocation4], 0
    // Predicated region
    $region2: #{autoregressive_link_predictor_forward.1} parent=1 // pred_check
      _
    $region3: #{autoregressive_link_predictor_forward.1} parent=1 // pred_check_branch
      %20 = sbr.rel (0) target = $region5
    $region4: #{autoregressive_link_predictor_forward.1} parent=1 // pred_region
      _
    $region5: #{autoregressive_link_predictor_forward.1} parent=1 // pred_fallthru
      _
    // Predicated region
    $region6: #{autoregressive_link_predictor_forward.1} parent=1 // pred_check
      _
    $region7: #{autoregressive_link_predictor_forward.1} parent=1 // pred_check_branch
      %22 = sbr.rel (0) target = $region9
    $region8: #{autoregressive_link_predictor_forward.1} parent=1 // pred_region
      _
    $region9: #{autoregressive_link_predictor_forward.1} parent=1 // pred_fallthru
      _
    // Predicated region
    $region10: #{autoregressive_link_predictor_forward.1} parent=1 // pred_check
      _
    $region11: #{autoregressive_link_predictor_forward.1} parent=1 // pred_check_branch
      %24 = sbr.rel (0) target = $region13
    $region12: #{autoregressive_link_predictor_forward.1} parent=1 // pred_region
      _
    $region13: #{autoregressive_link_predictor_forward.1} parent=1 // pred_fallthru
      _
    // Predicated region
    $region14: #{autoregressive_link_predictor_forward.1} parent=1 // pred_check
      _
    $region15: #{autoregressive_link_predictor_forward.1} parent=1 // pred_check_branch
      %26 = sbr.rel (0) target = $region17
    $region16: #{autoregressive_link_predictor_forward.1} parent=1 // pred_region
      _
    $region17: #{autoregressive_link_predictor_forward.1} parent=1 // pred_fallthru
      _
    // Predicated region
    $region18: #{autoregressive_link_predictor_forward.1} parent=1 // pred_check
      _
    $region19: #{autoregressive_link_predictor_forward.1} parent=1 // pred_check_branch
      %28 = sbr.rel (0) target = $region21
    $region20: #{autoregressive_link_predictor_forward.1} parent=1 // pred_region
      _
    $region21: #{autoregressive_link_predictor_forward.1} parent=1 // pred_fallthru
      _
    // Predicated region
    $region22: #{autoregressive_link_predictor_forward.1} parent=1 // pred_check
      _
    $region23: #{autoregressive_link_predictor_forward.1} parent=1 // pred_check_branch
      %30 = sbr.rel (0) target = $region25
    $region24: #{autoregressive_link_predictor_forward.1} parent=1 // pred_region
      _
    $region25: #{autoregressive_link_predictor_forward.1} parent=1 // pred_fallthru
      _
    // Predicated region
    $region26: #{autoregressive_link_predictor_forward.1} parent=1 // pred_check
      _
    $region27: #{autoregressive_link_predictor_forward.1} parent=1 // pred_check_branch
      %32 = sbr.rel (0) target = $region29
    $region28: #{autoregressive_link_predictor_forward.1} parent=1 // pred_region
      _
    $region29: #{autoregressive_link_predictor_forward.1} parent=1 // pred_fallthru
      _
    // Predicated region
    $region30: #{autoregressive_link_predictor_forward.1} parent=1 // pred_check
      _
    $region31: #{autoregressive_link_predictor_forward.1} parent=1 // pred_check_branch
      %34 = sbr.rel (0) target = $region33
    $region32: #{autoregressive_link_predictor_forward.1} parent=1 // pred_region
      _
    $region33: #{autoregressive_link_predictor_forward.1} parent=1 // pred_fallthru
      _
    // Predicated region
    $region34: #{autoregressive_link_predictor_forward.1} parent=1 // pred_check
      _
    $region35: #{autoregressive_link_predictor_forward.1} parent=1 // pred_check_branch
      %36 = sbr.rel (0) target = $region37
    $region36: #{autoregressive_link_predictor_forward.1} parent=1 // pred_region
      _
    $region37: #{autoregressive_link_predictor_forward.1} parent=1 // pred_fallthru
      _
    // Predicated region
    $region38: #{autoregressive_link_predictor_forward.1} parent=1 // pred_check
      _
    $region39: #{autoregressive_link_predictor_forward.1} parent=1 // pred_check_branch
      %38 = sbr.rel (0) target = $region41
    $region40: #{autoregressive_link_predictor_forward.1} parent=1 // pred_region
      _
    $region41: #{autoregressive_link_predictor_forward.1} parent=1 // pred_fallthru
      _
    // Predicated region
    $region42: #{autoregressive_link_predictor_forward.1} parent=1 // pred_check
      _
    $region43: #{autoregressive_link_predictor_forward.1} parent=1 // pred_check_branch
      %40 = sbr.rel (0) target = $region45
    $region44: #{autoregressive_link_predictor_forward.1} parent=1 // pred_region
      _
    $region45: #{autoregressive_link_predictor_forward.1} parent=1 // pred_fallthru
      _
    %v41 = vld [vmem:[%s0] sm:$0xf]
    %v42 = vld [vmem:[%s0 + $0x4] sm:$0xf]
    %v43 = vld [vmem:[%s0 + $0x8] sm:$0xf]
    %v44 = vld [vmem:[%s0 + $0xc] sm:$0xf]
    %v45 = vld [vmem:[%s0 + $0x10] sm:$0xf]
    %v46 = vld [vmem:[%s0 + $0x14] sm:$0xf]
    %v47 = vld [vmem:[%s0 + $0x18] sm:$0xf]
    %v48 = vld [vmem:[%s0 + $0x1c] sm:$0xf]
    %v49 = vld [vmem:[%s0 + $0x20] sm:$0xf]
    %v50 = vld [vmem:[%s0 + $0x24] sm:$0xf]
    %v51 = vld [vmem:[%s0 + $0x28] sm:$0xf]
    %v52 = vld [vmem:[%s0 + $0x2c] sm:$0xf]
    %v53 = vld [vmem:[%s0 + $0x30] sm:$0xf]
    %v54 = vld [vmem:[%s0 + $0x34] sm:$0xf]
    %v55 = vld [vmem:[%s0 + $0x38] sm:$0xf]
    %v56 = vld [vmem:[%s0 + $0x3c] sm:$0xf]
    %v57 = vld [vmem:[%s0 + $0x40] sm:$0xf]
    %v58 = vld [vmem:[%s0 + $0x44] sm:$0xf]
    %v59 = vld [vmem:[%s0 + $0x48] sm:$0xf]
    %v60 = vld [vmem:[%s0 + $0x4c] sm:$0xf]
    %v61 = vld [vmem:[%s0 + $0x50] sm:$0xf]
    %v62 = vld [vmem:[%s0 + $0x54] sm:$0xf]
    %v63 = vld [vmem:[%s0 + $0x58] sm:$0xf]
    %v64 = vld [vmem:[%s0 + $0x5c] sm:$0xf]
    %v65 = vld [vmem:[%s0 + $0x60] sm:$0xf]
    %v66 = vld [vmem:[%s0 + $0x64] sm:$0xf]
    %v67 = vld [vmem:[%s0 + $0x68] sm:$0xf]
    %v68 = vld [vmem:[%s0 + $0x6c] sm:$0xf]
    %v69 = vld [vmem:[%s0 + $0x70] sm:$0xf]
    %v70 = vld [vmem:[%s0 + $0x74] sm:$0xf]
    %v71 = vld [vmem:[%s0 + $0x78] sm:$0xf]
    %v72 = vld [vmem:[%s0 + $0x7c] sm:$0xf]
    %v73 = vunpack.c.l.bf16 %v41
    %v74 = vunpack.c.l.bf16 %v42
    %v75 = vunpack.c.l.bf16 %v43
    %v76 = vunpack.c.l.bf16 %v44
    %v77 = vunpack.c.l.bf16 %v45
    %v78 = vunpack.c.l.bf16 %v46
    %v79 = vunpack.c.l.bf16 %v47
    %v80 = vunpack.c.l.bf16 %v48
    %v81 = vunpack.c.l.bf16 %v49
    %v82 = vunpack.c.l.bf16 %v50
    %v83 = vunpack.c.l.bf16 %v51
    %v84 = vunpack.c.l.bf16 %v52
    %v85 = vunpack.c.l.bf16 %v53
    %v86 = vunpack.c.l.bf16 %v54
    %v87 = vunpack.c.l.bf16 %v55
    %v88 = vunpack.c.l.bf16 %v56
    %v89 = vunpack.c.l.bf16 %v57
    %v90 = vunpack.c.l.bf16 %v58
    %v91 = vunpack.c.l.bf16 %v59
    %v92 = vunpack.c.l.bf16 %v60
    %v93 = vunpack.c.l.bf16 %v61
    %v94 = vunpack.c.l.bf16 %v62
    %v95 = vunpack.c.l.bf16 %v63
    %v96 = vunpack.c.l.bf16 %v64
    %v97 = vunpack.c.l.bf16 %v65
    %v98 = vunpack.c.l.bf16 %v66
    %v99 = vunpack.c.l.bf16 %v67
    %v100 = vunpack.c.l.bf16 %v68
    %v101 = vunpack.c.l.bf16 %v69
    %v102 = vunpack.c.l.bf16 %v70
    %v103 = vunpack.c.l.bf16 %v71
    %v104 = vunpack.c.l.bf16 %v72
    %v105 = vld [vmem:[%s1] sm:$0xf]
    %v106 = vld [vmem:[%s1 + $0x4] sm:$0xf]
    %v107 = vld [vmem:[%s1 + $0x8] sm:$0xf]
    %v108 = vld [vmem:[%s1 + $0xc] sm:$0xf]
    %v109 = vld [vmem:[%s1 + $0x10] sm:$0xf]
    %v110 = vld [vmem:[%s1 + $0x14] sm:$0xf]
    %v111 = vld [vmem:[%s1 + $0x18] sm:$0xf]
    %v112 = vld [vmem:[%s1 + $0x1c] sm:$0xf]
    %v113 = vld [vmem:[%s1 + $0x20] sm:$0xf]
    %v114 = vld [vmem:[%s1 + $0x24] sm:$0xf]
    %v115 = vld [vmem:[%s1 + $0x28] sm:$0xf]
    %v116 = vld [vmem:[%s1 + $0x2c] sm:$0xf]
    %v117 = vld [vmem:[%s1 + $0x30] sm:$0xf]
    %v118 = vld [vmem:[%s1 + $0x34] sm:$0xf]
    %v119 = vld [vmem:[%s1 + $0x38] sm:$0xf]
    %v120 = vld [vmem:[%s1 + $0x3c] sm:$0xf]
    %v121 = vld [vmem:[%s1 + $0x40] sm:$0xf]
    %v122 = vld [vmem:[%s1 + $0x44] sm:$0xf]
    %v123 = vld [vmem:[%s1 + $0x48] sm:$0xf]
    %v124 = vld [vmem:[%s1 + $0x4c] sm:$0xf]
    %v125 = vld [vmem:[%s1 + $0x50] sm:$0xf]
    %v126 = vld [vmem:[%s1 + $0x54] sm:$0xf]
    %v127 = vld [vmem:[%s1 + $0x58] sm:$0xf]
    %v128 = vld [vmem:[%s1 + $0x5c] sm:$0xf]
    %v129 = vld [vmem:[%s1 + $0x60] sm:$0xf]
    %v130 = vld [vmem:[%s1 + $0x64] sm:$0xf]
    %v131 = vld [vmem:[%s1 + $0x68] sm:$0xf]
    %v132 = vld [vmem:[%s1 + $0x6c] sm:$0xf]
    %v133 = vld [vmem:[%s1 + $0x70] sm:$0xf]
    %v134 = vld [vmem:[%s1 + $0x74] sm:$0xf]
    %v135 = vld [vmem:[%s1 + $0x78] sm:$0xf]
    %v136 = vld [vmem:[%s1 + $0x7c] sm:$0xf]
    %v137 = vunpack.c.l.bf16 %v105
    %v138 = vunpack.c.l.bf16 %v106
    %v139 = vunpack.c.l.bf16 %v107
    %v140 = vunpack.c.l.bf16 %v108
    %v141 = vunpack.c.l.bf16 %v109
    %v142 = vunpack.c.l.bf16 %v110
    %v143 = vunpack.c.l.bf16 %v111
    %v144 = vunpack.c.l.bf16 %v112
    %v145 = vunpack.c.l.bf16 %v113
    %v146 = vunpack.c.l.bf16 %v114
    %v147 = vunpack.c.l.bf16 %v115
    %v148 = vunpack.c.l.bf16 %v116
    %v149 = vunpack.c.l.bf16 %v117
    %v150 = vunpack.c.l.bf16 %v118
    %v151 = vunpack.c.l.bf16 %v119
    %v152 = vunpack.c.l.bf16 %v120
    %v153 = vunpack.c.l.bf16 %v121
    %v154 = vunpack.c.l.bf16 %v122
    %v155 = vunpack.c.l.bf16 %v123
    %v156 = vunpack.c.l.bf16 %v124
    %v157 = vunpack.c.l.bf16 %v125
    %v158 = vunpack.c.l.bf16 %v126
    %v159 = vunpack.c.l.bf16 %v127
    %v160 = vunpack.c.l.bf16 %v128
    %v161 = vunpack.c.l.bf16 %v129
    %v162 = vunpack.c.l.bf16 %v130
    %v163 = vunpack.c.l.bf16 %v131
    %v164 = vunpack.c.l.bf16 %v132
    %v165 = vunpack.c.l.bf16 %v133
    %v166 = vunpack.c.l.bf16 %v134
    %v167 = vunpack.c.l.bf16 %v135
    %v168 = vunpack.c.l.bf16 %v136
    %201 = vrot.lane.b32.xlu0 %v137, 32
    %v202 = vpop.permute.xlu0 %201
    %203 = vrot.lane.b32.xlu0 %v138, 32
    %v204 = vpop.permute.xlu0 %203
    %205 = vrot.lane.b32.xlu0 %v139, 32
    %v206 = vpop.permute.xlu0 %205
    %207 = vrot.lane.b32.xlu0 %v140, 32
    %v208 = vpop.permute.xlu0 %207
    %209 = vrot.lane.b32.xlu0 %v141, 32
    %v210 = vpop.permute.xlu0 %209
    %211 = vrot.lane.b32.xlu0 %v142, 32
    %v212 = vpop.permute.xlu0 %211
    %213 = vrot.lane.b32.xlu0 %v143, 32
    %v214 = vpop.permute.xlu0 %213
    %215 = vrot.lane.b32.xlu0 %v144, 32
    %v216 = vpop.permute.xlu0 %215
    %217 = vrot.lane.b32.xlu0 %v145, 32
    %v218 = vpop.permute.xlu0 %217
    %219 = vrot.lane.b32.xlu0 %v146, 32
    %v220 = vpop.permute.xlu0 %219
    %221 = vrot.lane.b32.xlu0 %v147, 32
    %v222 = vpop.permute.xlu0 %221
    %223 = vrot.lane.b32.xlu0 %v148, 32
    %v224 = vpop.permute.xlu0 %223
    %225 = vrot.lane.b32.xlu0 %v149, 32
    %v226 = vpop.permute.xlu0 %225
    %227 = vrot.lane.b32.xlu0 %v150, 32
    %v228 = vpop.permute.xlu0 %227
    %229 = vrot.lane.b32.xlu0 %v151, 32
    %v230 = vpop.permute.xlu0 %229
    %231 = vrot.lane.b32.xlu0 %v152, 32
    %v232 = vpop.permute.xlu0 %231
    %233 = vrot.lane.b32.xlu0 %v153, 32
    %v234 = vpop.permute.xlu0 %233
    %235 = vrot.lane.b32.xlu0 %v154, 32
    %v236 = vpop.permute.xlu0 %235
    %237 = vrot.lane.b32.xlu0 %v155, 32
    %v238 = vpop.permute.xlu0 %237
    %239 = vrot.lane.b32.xlu0 %v156, 32
    %v240 = vpop.permute.xlu0 %239
    %241 = vrot.lane.b32.xlu0 %v157, 32
    %v242 = vpop.permute.xlu0 %241
    %243 = vrot.lane.b32.xlu0 %v158, 32
    %v244 = vpop.permute.xlu0 %243
    %245 = vrot.lane.b32.xlu0 %v159, 32
    %v246 = vpop.permute.xlu0 %245
    %247 = vrot.lane.b32.xlu0 %v160, 32
    %v248 = vpop.permute.xlu0 %247
    %249 = vrot.lane.b32.xlu0 %v161, 32
    %v250 = vpop.permute.xlu0 %249
    %251 = vrot.lane.b32.xlu0 %v162, 32
    %v252 = vpop.permute.xlu0 %251
    %253 = vrot.lane.b32.xlu0 %v163, 32
    %v254 = vpop.permute.xlu0 %253
    %255 = vrot.lane.b32.xlu0 %v164, 32
    %v256 = vpop.permute.xlu0 %255
    %257 = vrot.lane.b32.xlu0 %v165, 32
    %v258 = vpop.permute.xlu0 %257
    %259 = vrot.lane.b32.xlu0 %v166, 32
    %v260 = vpop.permute.xlu0 %259
    %261 = vrot.lane.b32.xlu0 %v167, 32
    %v262 = vpop.permute.xlu0 %261
    %263 = vrot.lane.b32.xlu0 %v168, 32
    %v264 = vpop.permute.xlu0 %263
    %vm297 = vcmask 261120
    %v298 = vsel %vm297, %v73, %v202
    %v299 = vsel %vm297, %v74, %v204
    %v300 = vsel %vm297, %v75, %v206
    %v301 = vsel %vm297, %v76, %v208
    %v302 = vsel %vm297, %v77, %v210
    %v303 = vsel %vm297, %v78, %v212
    %v304 = vsel %vm297, %v79, %v214
    %v305 = vsel %vm297, %v80, %v216
    %v306 = vsel %vm297, %v81, %v218
    %v307 = vsel %vm297, %v82, %v220
    %v308 = vsel %vm297, %v83, %v222
    %v309 = vsel %vm297, %v84, %v224
    %v310 = vsel %vm297, %v85, %v226
    %v311 = vsel %vm297, %v86, %v228
    %v312 = vsel %vm297, %v87, %v230
    %v313 = vsel %vm297, %v88, %v232
    %v314 = vsel %vm297, %v89, %v234
    %v315 = vsel %vm297, %v90, %v236
    %v316 = vsel %vm297, %v91, %v238
    %v317 = vsel %vm297, %v92, %v240
    %v318 = vsel %vm297, %v93, %v242
    %v319 = vsel %vm297, %v94, %v244
    %v320 = vsel %vm297, %v95, %v246
    %v321 = vsel %vm297, %v96, %v248
    %v322 = vsel %vm297, %v97, %v250
    %v323 = vsel %vm297, %v98, %v252
    %v324 = vsel %vm297, %v99, %v254
    %v325 = vsel %vm297, %v100, %v256
    %v326 = vsel %vm297, %v101, %v258
    %v327 = vsel %vm297, %v102, %v260
    %v328 = vsel %vm297, %v103, %v262
    %v329 = vsel %vm297, %v104, %v264
    %v330 = vld [vmem:[%s2] sm:$0xff]
    %v331 = vld [vmem:[%s2 + $0x8] sm:$0xff]
    %v332 = vld [vmem:[%s2 + $0x10] sm:$0xff]
    %v333 = vld [vmem:[%s2 + $0x18] sm:$0xff]
    %v334 = vld [vmem:[%s2 + $0x20] sm:$0xff]
    %v335 = vld [vmem:[%s2 + $0x28] sm:$0xff]
    %v336 = vld [vmem:[%s2 + $0x30] sm:$0xff]
    %v337 = vld [vmem:[%s2 + $0x38] sm:$0xff]
    %v338 = vld [vmem:[%s3] sm:$0x1]
    %v340 = vlaneseq
    %v341 = vshrl.u32 %v340, 7
    %v342 = vsub.s32 0, %v341
    %v343 = vrot.slane %v338, %v342
    %vm345 = vcmask 523264
    %v347 = vsel %vm345, %v298, 0
    %v350 = vsel %vm345, %v299, 0
    %v353 = vsel %vm345, %v300, 0
    %v356 = vsel %vm345, %v301, 0
    %v359 = vsel %vm345, %v302, 0
    %v362 = vsel %vm345, %v303, 0
    %v365 = vsel %vm345, %v304, 0
    %v368 = vsel %vm345, %v305, 0
    %v371 = vsel %vm345, %v306, 0
    %v374 = vsel %vm345, %v307, 0
    %v377 = vsel %vm345, %v308, 0
    %v380 = vsel %vm345, %v309, 0
    %v383 = vsel %vm345, %v310, 0
    %v386 = vsel %vm345, %v311, 0
    %v389 = vsel %vm345, %v312, 0
    %v392 = vsel %vm345, %v313, 0
    %v395 = vsel %vm345, %v314, 0
    %v398 = vsel %vm345, %v315, 0
    %v401 = vsel %vm345, %v316, 0
    %v404 = vsel %vm345, %v317, 0
    %v407 = vsel %vm345, %v318, 0
    %v410 = vsel %vm345, %v319, 0
    %v413 = vsel %vm345, %v320, 0
    %v416 = vsel %vm345, %v321, 0
    %v419 = vsel %vm345, %v322, 0
    %v422 = vsel %vm345, %v323, 0
    %v425 = vsel %vm345, %v324, 0
    %v428 = vsel %vm345, %v325, 0
    %v431 = vsel %vm345, %v326, 0
    %v434 = vsel %vm345, %v327, 0
    %v437 = vsel %vm345, %v328, 0
    %v440 = vsel %vm345, %v329, 0
    %442 = vmatprep.subr.mxu0 0.0
    %443 = vmatpush1.msra.mxu0 %v330
    %444 = vmatprep.subr.mxu0 0.0
    %445 = vmatpush1.msra.mxu0 %v331
    %446 = vmatprep.subr.mxu0 0.0
    %447 = vmatpush1.msra.mxu0 %v332
    %448 = vmatprep.subr.mxu0 0.0
    %449 = vmatpush1.msra.mxu0 %v333
    %450 = vmatprep.subr.mxu0 0.0
    %451 = vmatpush1.msra.mxu0 %v334
    %452 = vmatprep.subr.mxu0 0.0
    %453 = vmatpush1.msra.mxu0 %v335
    %454 = vmatprep.subr.mxu0 0.0
    %455 = vmatpush1.msra.mxu0 %v336
    %456 = vmatprep.subr.mxu0 0.0
    %457 = vmatpush1.msra.mxu0 %v337
    %458 = vmatprep.subr.mxu0 0.0
    %459 = vmatpush1.msra.mxu0 0.0
    %460 = vmatprep.subr.mxu0 0.0
    %461 = vmatpush1.msra.mxu0 0.0
    %462 = vmatprep.subr.mxu0 0.0
    %463 = vmatpush1.msra.mxu0 0.0
    %464 = vmatprep.subr.mxu0 0.0
    %465 = vmatpush1.msra.mxu0 0.0
    %466 = vmatprep.subr.mxu0 0.0
    %467 = vmatpush1.msra.mxu0 0.0
    %468 = vmatprep.subr.mxu0 0.0
    %469 = vmatpush1.msra.mxu0 0.0
    %470 = vmatprep.subr.mxu0 0.0
    %471 = vmatpush1.msra.mxu0 0.0
    %472 = vmatprep.subr.mxu0 0.0
    %473 = vmatpush1.msra.mxu0 0.0
    %474 = vmatprep.subr.mxu0 0.0
    %475 = vmatpush1.msra.mxu0 0.0
    %476 = vmatprep.subr.mxu0 0.0
    %477 = vmatpush1.msra.mxu0 0.0
    %478 = vmatprep.subr.mxu0 0.0
    %479 = vmatpush1.msra.mxu0 0.0
    %480 = vmatprep.subr.mxu0 0.0
    %481 = vmatpush1.msra.mxu0 0.0
    %482 = vmatprep.subr.mxu0 0.0
    %483 = vmatpush1.msra.mxu0 0.0
    %484 = vmatprep.subr.mxu0 0.0
    %485 = vmatpush1.msra.mxu0 0.0
    %486 = vmatprep.subr.mxu0 0.0
    %487 = vmatpush1.msra.mxu0 0.0
    %488 = vmatprep.subr.mxu0 0.0
    %489 = vmatpush1.msra.mxu0 0.0
    %490 = vmatprep.subr.mxu0 0.0
    %491 = vmatpush1.msra.mxu0 0.0
    %492 = vmatprep.subr.mxu0 0.0
    %493 = vmatpush1.msra.mxu0 0.0
    %494 = vmatprep.subr.mxu0 0.0
    %495 = vmatpush1.msra.mxu0 0.0
    %496 = vmatprep.subr.mxu0 0.0
    %497 = vmatpush1.msra.mxu0 0.0
    %498 = vmatprep.subr.mxu0 0.0
    %499 = vmatpush1.msra.mxu0 0.0
    %500 = vmatprep.subr.mxu0 0.0
    %501 = vmatpush1.msra.mxu0 0.0
    %502 = vmatprep.subr.mxu0 0.0
    %503 = vmatpush1.msra.mxu0 0.0
    %504 = vmatprep.subr.mxu0 0.0
    %505 = vmatpush1.msra.mxu0 0.0
    %506 = vmatprep.mubr.f32.mxu0 0.0
    %507 = vmatmul.mubr.f32.gmra.mrb[0].mxu0 %v347
    %v508 = vpop.f32.mrb[0].mxu0
    %v509 = vadd.f32 %v343, %v508
    %v510 = vpop.f32.mrb[0].mxu0
    %511 = vmatprep.mubr.f32.mxu0 0.0
    %512 = vmatmul.mubr.f32.gmra.mrb[0].mxu0 %v350
    %v513 = vpop.f32.mrb[0].mxu0
    %v514 = vadd.f32 %v343, %v513
    %v515 = vpop.f32.mrb[0].mxu0
    %516 = vmatprep.mubr.f32.mxu0 0.0
    %517 = vmatmul.mubr.f32.gmra.mrb[0].mxu0 %v353
    %v518 = vpop.f32.mrb[0].mxu0
    %v519 = vadd.f32 %v343, %v518
    %v520 = vpop.f32.mrb[0].mxu0
    %521 = vmatprep.mubr.f32.mxu0 0.0
    %522 = vmatmul.mubr.f32.gmra.mrb[0].mxu0 %v356
    %v523 = vpop.f32.mrb[0].mxu0
    %v524 = vadd.f32 %v343, %v523
    %v525 = vpop.f32.mrb[0].mxu0
    %526 = vmatprep.mubr.f32.mxu0 0.0
    %527 = vmatmul.mubr.f32.gmra.mrb[0].mxu0 %v359
    %v528 = vpop.f32.mrb[0].mxu0
    %v529 = vadd.f32 %v343, %v528
    %v530 = vpop.f32.mrb[0].mxu0
    %531 = vmatprep.mubr.f32.mxu0 0.0
    %532 = vmatmul.mubr.f32.gmra.mrb[0].mxu0 %v362
    %v533 = vpop.f32.mrb[0].mxu0
    %v534 = vadd.f32 %v343, %v533
    %v535 = vpop.f32.mrb[0].mxu0
    %536 = vmatprep.mubr.f32.mxu0 0.0
    %537 = vmatmul.mubr.f32.gmra.mrb[0].mxu0 %v365
    %v538 = vpop.f32.mrb[0].mxu0
    %v539 = vadd.f32 %v343, %v538
    %v540 = vpop.f32.mrb[0].mxu0
    %541 = vmatprep.mubr.f32.mxu0 0.0
    %542 = vmatmul.mubr.f32.gmra.mrb[0].mxu0 %v368
    %v543 = vpop.f32.mrb[0].mxu0
    %v544 = vadd.f32 %v343, %v543
    %v545 = vpop.f32.mrb[0].mxu0
    %546 = vmatprep.mubr.f32.mxu0 0.0
    %547 = vmatmul.mubr.f32.gmra.mrb[0].mxu0 %v371
    %v548 = vpop.f32.mrb[0].mxu0
    %v549 = vadd.f32 %v343, %v548
    %v550 = vpop.f32.mrb[0].mxu0
    %551 = vmatprep.mubr.f32.mxu0 0.0
    %552 = vmatmul.mubr.f32.gmra.mrb[0].mxu0 %v374
    %v553 = vpop.f32.mrb[0].mxu0
    %v554 = vadd.f32 %v343, %v553
    %v555 = vpop.f32.mrb[0].mxu0
    %556 = vmatprep.mubr.f32.mxu0 0.0
    %557 = vmatmul.mubr.f32.gmra.mrb[0].mxu0 %v377
    %v558 = vpop.f32.mrb[0].mxu0
    %v559 = vadd.f32 %v343, %v558
    %v560 = vpop.f32.mrb[0].mxu0
    %561 = vmatprep.mubr.f32.mxu0 0.0
    %562 = vmatmul.mubr.f32.gmra.mrb[0].mxu0 %v380
    %v563 = vpop.f32.mrb[0].mxu0
    %v564 = vadd.f32 %v343, %v563
    %v565 = vpop.f32.mrb[0].mxu0
    %566 = vmatprep.mubr.f32.mxu0 0.0
    %567 = vmatmul.mubr.f32.gmra.mrb[0].mxu0 %v383
    %v568 = vpop.f32.mrb[0].mxu0
    %v569 = vadd.f32 %v343, %v568
    %v570 = vpop.f32.mrb[0].mxu0
    %571 = vmatprep.mubr.f32.mxu0 0.0
    %572 = vmatmul.mubr.f32.gmra.mrb[0].mxu0 %v386
    %v573 = vpop.f32.mrb[0].mxu0
    %v574 = vadd.f32 %v343, %v573
    %v575 = vpop.f32.mrb[0].mxu0
    %576 = vmatprep.mubr.f32.mxu0 0.0
    %577 = vmatmul.mubr.f32.gmra.mrb[0].mxu0 %v389
    %v578 = vpop.f32.mrb[0].mxu0
    %v579 = vadd.f32 %v343, %v578
    %v580 = vpop.f32.mrb[0].mxu0
    %581 = vmatprep.mubr.f32.mxu0 0.0
    %582 = vmatmul.mubr.f32.gmra.mrb[0].mxu0 %v392
    %v583 = vpop.f32.mrb[0].mxu0
    %v584 = vadd.f32 %v343, %v583
    %v585 = vpop.f32.mrb[0].mxu0
    %586 = vmatprep.mubr.f32.mxu0 0.0
    %587 = vmatmul.mubr.f32.gmra.mrb[0].mxu0 %v395
    %v588 = vpop.f32.mrb[0].mxu0
    %v589 = vadd.f32 %v343, %v588
    %v590 = vpop.f32.mrb[0].mxu0
    %591 = vmatprep.mubr.f32.mxu0 0.0
    %592 = vmatmul.mubr.f32.gmra.mrb[0].mxu0 %v398
    %v593 = vpop.f32.mrb[0].mxu0
    %v594 = vadd.f32 %v343, %v593
    %v595 = vpop.f32.mrb[0].mxu0
    %596 = vmatprep.mubr.f32.mxu0 0.0
    %597 = vmatmul.mubr.f32.gmra.mrb[0].mxu0 %v401
    %v598 = vpop.f32.mrb[0].mxu0
    %v599 = vadd.f32 %v343, %v598
    %v600 = vpop.f32.mrb[0].mxu0
    %601 = vmatprep.mubr.f32.mxu0 0.0
    %602 = vmatmul.mubr.f32.gmra.mrb[0].mxu0 %v404
    %v603 = vpop.f32.mrb[0].mxu0
    %v604 = vadd.f32 %v343, %v603
    %v605 = vpop.f32.mrb[0].mxu0
    %606 = vmatprep.mubr.f32.mxu0 0.0
    %607 = vmatmul.mubr.f32.gmra.mrb[0].mxu0 %v407
    %v608 = vpop.f32.mrb[0].mxu0
    %v609 = vadd.f32 %v343, %v608
    %v610 = vpop.f32.mrb[0].mxu0
    %611 = vmatprep.mubr.f32.mxu0 0.0
    %612 = vmatmul.mubr.f32.gmra.mrb[0].mxu0 %v410
    %v613 = vpop.f32.mrb[0].mxu0
    %v614 = vadd.f32 %v343, %v613
    %v615 = vpop.f32.mrb[0].mxu0
    %616 = vmatprep.mubr.f32.mxu0 0.0
    %617 = vmatmul.mubr.f32.gmra.mrb[0].mxu0 %v413
    %v618 = vpop.f32.mrb[0].mxu0
    %v619 = vadd.f32 %v343, %v618
    %v620 = vpop.f32.mrb[0].mxu0
    %621 = vmatprep.mubr.f32.mxu0 0.0
    %622 = vmatmul.mubr.f32.gmra.mrb[0].mxu0 %v416
    %v623 = vpop.f32.mrb[0].mxu0
    %v624 = vadd.f32 %v343, %v623
    %v625 = vpop.f32.mrb[0].mxu0
    %626 = vmatprep.mubr.f32.mxu0 0.0
    %627 = vmatmul.mubr.f32.gmra.mrb[0].mxu0 %v419
    %v628 = vpop.f32.mrb[0].mxu0
    %v629 = vadd.f32 %v343, %v628
    %v630 = vpop.f32.mrb[0].mxu0
    %631 = vmatprep.mubr.f32.mxu0 0.0
    %632 = vmatmul.mubr.f32.gmra.mrb[0].mxu0 %v422
    %v633 = vpop.f32.mrb[0].mxu0
    %v634 = vadd.f32 %v343, %v633
    %v635 = vpop.f32.mrb[0].mxu0
    %636 = vmatprep.mubr.f32.mxu0 0.0
    %637 = vmatmul.mubr.f32.gmra.mrb[0].mxu0 %v425
    %v638 = vpop.f32.mrb[0].mxu0
    %v639 = vadd.f32 %v343, %v638
    %v640 = vpop.f32.mrb[0].mxu0
    %641 = vmatprep.mubr.f32.mxu0 0.0
    %642 = vmatmul.mubr.f32.gmra.mrb[0].mxu0 %v428
    %v643 = vpop.f32.mrb[0].mxu0
    %v644 = vadd.f32 %v343, %v643
    %v645 = vpop.f32.mrb[0].mxu0
    %646 = vmatprep.mubr.f32.mxu0 0.0
    %647 = vmatmul.mubr.f32.gmra.mrb[0].mxu0 %v431
    %v648 = vpop.f32.mrb[0].mxu0
    %v649 = vadd.f32 %v343, %v648
    %v650 = vpop.f32.mrb[0].mxu0
    %651 = vmatprep.mubr.f32.mxu0 0.0
    %652 = vmatmul.mubr.f32.gmra.mrb[0].mxu0 %v434
    %v653 = vpop.f32.mrb[0].mxu0
    %v654 = vadd.f32 %v343, %v653
    %v655 = vpop.f32.mrb[0].mxu0
    %656 = vmatprep.mubr.f32.mxu0 0.0
    %657 = vmatmul.mubr.f32.gmra.mrb[0].mxu0 %v437
    %v658 = vpop.f32.mrb[0].mxu0
    %v659 = vadd.f32 %v343, %v658
    %v660 = vpop.f32.mrb[0].mxu0
    %661 = vmatprep.mubr.f32.mxu0 0.0
    %662 = vmatmul.mubr.f32.gmra.mrb[0].mxu0 %v440
    %v663 = vpop.f32.mrb[0].mxu0
    %v664 = vadd.f32 %v343, %v663
    %v665 = vpop.f32.mrb[0].mxu0
    %666 = vdwg.mxu0
    %v667 = vmax.f32 %v509, 0.0
    %v668 = vmax.f32 %v514, 0.0
    %v669 = vmax.f32 %v519, 0.0
    %v670 = vmax.f32 %v524, 0.0
    %v671 = vmax.f32 %v529, 0.0
    %v672 = vmax.f32 %v534, 0.0
    %v673 = vmax.f32 %v539, 0.0
    %v674 = vmax.f32 %v544, 0.0
    %v675 = vmax.f32 %v549, 0.0
    %v676 = vmax.f32 %v554, 0.0
    %v677 = vmax.f32 %v559, 0.0
    %v678 = vmax.f32 %v564, 0.0
    %v679 = vmax.f32 %v569, 0.0
    %v680 = vmax.f32 %v574, 0.0
    %v681 = vmax.f32 %v579, 0.0
    %v682 = vmax.f32 %v584, 0.0
    %v683 = vmax.f32 %v589, 0.0
    %v684 = vmax.f32 %v594, 0.0
    %v685 = vmax.f32 %v599, 0.0
    %v686 = vmax.f32 %v604, 0.0
    %v687 = vmax.f32 %v609, 0.0
    %v688 = vmax.f32 %v614, 0.0
    %v689 = vmax.f32 %v619, 0.0
    %v690 = vmax.f32 %v624, 0.0
    %v691 = vmax.f32 %v629, 0.0
    %v692 = vmax.f32 %v634, 0.0
    %v693 = vmax.f32 %v639, 0.0
    %v694 = vmax.f32 %v644, 0.0
    %v695 = vmax.f32 %v649, 0.0
    %v696 = vmax.f32 %v654, 0.0
    %v697 = vmax.f32 %v659, 0.0
    %v698 = vmax.f32 %v664, 0.0
    %v699 = vld [vmem:[%s4] sm:$0xff]
    %v700 = vld [vmem:[%s4 + $0x8] sm:$0xff]
    %v701 = vld [vmem:[%s4 + $0x10] sm:$0xff]
    %v702 = vld [vmem:[%s4 + $0x18] sm:$0xff]
    %v703 = vld [vmem:[%s4 + $0x20] sm:$0xff]
    %v704 = vld [vmem:[%s4 + $0x28] sm:$0xff]
    %v705 = vld [vmem:[%s4 + $0x30] sm:$0xff]
    %v706 = vld [vmem:[%s4 + $0x38] sm:$0xff]
    %v708 = vsel %vm345, %v667, 0
    %v711 = vsel %vm345, %v668, 0
    %v714 = vsel %vm345, %v669, 0
    %v717 = vsel %vm345, %v670, 0
    %v720 = vsel %vm345, %v671, 0
    %v723 = vsel %vm345, %v672, 0
    %v726 = vsel %vm345, %v673, 0
    %v729 = vsel %vm345, %v674, 0
    %v732 = vsel %vm345, %v675, 0
    %v735 = vsel %vm345, %v676, 0
    %v738 = vsel %vm345, %v677, 0
    %v741 = vsel %vm345, %v678, 0
    %v744 = vsel %vm345, %v679, 0
    %v747 = vsel %vm345, %v680, 0
    %v750 = vsel %vm345, %v681, 0
    %v753 = vsel %vm345, %v682, 0
    %v756 = vsel %vm345, %v683, 0
    %v759 = vsel %vm345, %v684, 0
    %v762 = vsel %vm345, %v685, 0
    %v765 = vsel %vm345, %v686, 0
    %v768 = vsel %vm345, %v687, 0
    %v771 = vsel %vm345, %v688, 0
    %v774 = vsel %vm345, %v689, 0
    %v777 = vsel %vm345, %v690, 0
    %v780 = vsel %vm345, %v691, 0
    %v783 = vsel %vm345, %v692, 0
    %v786 = vsel %vm345, %v693, 0
    %v789 = vsel %vm345, %v694, 0
    %v792 = vsel %vm345, %v695, 0
    %v795 = vsel %vm345, %v696, 0
    %v798 = vsel %vm345, %v697, 0
    %v801 = vsel %vm345, %v698, 0
    %803 = vmatprep.subr.mxu0 0.0
    %804 = vmatpush1.msra.mxu0 %v699
    %805 = vmatprep.subr.mxu0 0.0
    %806 = vmatpush1.msra.mxu0 %v700
    %807 = vmatprep.subr.mxu0 0.0
    %808 = vmatpush1.msra.mxu0 %v701
    %809 = vmatprep.subr.mxu0 0.0
    %810 = vmatpush1.msra.mxu0 %v702
    %811 = vmatprep.subr.mxu0 0.0
    %812 = vmatpush1.msra.mxu0 %v703
    %813 = vmatprep.subr.mxu0 0.0
    %814 = vmatpush1.msra.mxu0 %v704
    %815 = vmatprep.subr.mxu0 0.0
    %816 = vmatpush1.msra.mxu0 %v705
    %817 = vmatprep.subr.mxu0 0.0
    %818 = vmatpush1.msra.mxu0 %v706
    %819 = vmatprep.subr.mxu0 0.0
    %820 = vmatpush1.msra.mxu0 0.0
    %821 = vmatprep.subr.mxu0 0.0
    %822 = vmatpush1.msra.mxu0 0.0
    %823 = vmatprep.subr.mxu0 0.0
    %824 = vmatpush1.msra.mxu0 0.0
    %825 = vmatprep.subr.mxu0 0.0
    %826 = vmatpush1.msra.mxu0 0.0
    %827 = vmatprep.subr.mxu0 0.0
    %828 = vmatpush1.msra.mxu0 0.0
    %829 = vmatprep.subr.mxu0 0.0
    %830 = vmatpush1.msra.mxu0 0.0
    %831 = vmatprep.subr.mxu0 0.0
    %832 = vmatpush1.msra.mxu0 0.0
    %833 = vmatprep.subr.mxu0 0.0
    %834 = vmatpush1.msra.mxu0 0.0
    %835 = vmatprep.subr.mxu0 0.0
    %836 = vmatpush1.msra.mxu0 0.0
    %837 = vmatprep.subr.mxu0 0.0
    %838 = vmatpush1.msra.mxu0 0.0
    %839 = vmatprep.subr.mxu0 0.0
    %840 = vmatpush1.msra.mxu0 0.0
    %841 = vmatprep.subr.mxu0 0.0
    %842 = vmatpush1.msra.mxu0 0.0
    %843 = vmatprep.subr.mxu0 0.0
    %844 = vmatpush1.msra.mxu0 0.0
    %845 = vmatprep.subr.mxu0 0.0
    %846 = vmatpush1.msra.mxu0 0.0
    %847 = vmatprep.subr.mxu0 0.0
    %848 = vmatpush1.msra.mxu0 0.0
    %849 = vmatprep.subr.mxu0 0.0
    %850 = vmatpush1.msra.mxu0 0.0
    %851 = vmatprep.subr.mxu0 0.0
    %852 = vmatpush1.msra.mxu0 0.0
    %853 = vmatprep.subr.mxu0 0.0
    %854 = vmatpush1.msra.mxu0 0.0
    %855 = vmatprep.subr.mxu0 0.0
    %856 = vmatpush1.msra.mxu0 0.0
    %857 = vmatprep.subr.mxu0 0.0
    %858 = vmatpush1.msra.mxu0 0.0
    %859 = vmatprep.subr.mxu0 0.0
    %860 = vmatpush1.msra.mxu0 0.0
    %861 = vmatprep.subr.mxu0 0.0
    %862 = vmatpush1.msra.mxu0 0.0
    %863 = vmatprep.subr.mxu0 0.0
    %864 = vmatpush1.msra.mxu0 0.0
    %865 = vmatprep.subr.mxu0 0.0
    %866 = vmatpush1.msra.mxu0 0.0
    %867 = vmatprep.mubr.f32.mxu0 0.0
    %868 = vmatmul.mubr.f32.gmra.mrb[0].mxu0 %v708
    %v869 = vpop.f32.mrb[0].mxu0
    %v870 = vadd.f32 0.0, %v869
    %v871 = vpop.f32.mrb[0].mxu0
    %872 = vmatprep.mubr.f32.mxu0 0.0
    %873 = vmatmul.mubr.f32.gmra.mrb[0].mxu0 %v711
    %v874 = vpop.f32.mrb[0].mxu0
    %v875 = vadd.f32 0.0, %v874
    %v876 = vpop.f32.mrb[0].mxu0
    %877 = vmatprep.mubr.f32.mxu0 0.0
    %878 = vmatmul.mubr.f32.gmra.mrb[0].mxu0 %v714
    %v879 = vpop.f32.mrb[0].mxu0
    %v880 = vadd.f32 0.0, %v879
    %v881 = vpop.f32.mrb[0].mxu0
    %882 = vmatprep.mubr.f32.mxu0 0.0
    %883 = vmatmul.mubr.f32.gmra.mrb[0].mxu0 %v717
    %v884 = vpop.f32.mrb[0].mxu0
    %v885 = vadd.f32 0.0, %v884
    %v886 = vpop.f32.mrb[0].mxu0
    %887 = vmatprep.mubr.f32.mxu0 0.0
    %888 = vmatmul.mubr.f32.gmra.mrb[0].mxu0 %v720
    %v889 = vpop.f32.mrb[0].mxu0
    %v890 = vadd.f32 0.0, %v889
    %v891 = vpop.f32.mrb[0].mxu0
    %892 = vmatprep.mubr.f32.mxu0 0.0
    %893 = vmatmul.mubr.f32.gmra.mrb[0].mxu0 %v723
    %v894 = vpop.f32.mrb[0].mxu0
    %v895 = vadd.f32 0.0, %v894
    %v896 = vpop.f32.mrb[0].mxu0
    %897 = vmatprep.mubr.f32.mxu0 0.0
    %898 = vmatmul.mubr.f32.gmra.mrb[0].mxu0 %v726
    %v899 = vpop.f32.mrb[0].mxu0
    %v900 = vadd.f32 0.0, %v899
    %v901 = vpop.f32.mrb[0].mxu0
    %902 = vmatprep.mubr.f32.mxu0 0.0
    %903 = vmatmul.mubr.f32.gmra.mrb[0].mxu0 %v729
    %v904 = vpop.f32.mrb[0].mxu0
    %v905 = vadd.f32 0.0, %v904
    %v906 = vpop.f32.mrb[0].mxu0
    %907 = vmatprep.mubr.f32.mxu0 0.0
    %908 = vmatmul.mubr.f32.gmra.mrb[0].mxu0 %v732
    %v909 = vpop.f32.mrb[0].mxu0
    %v910 = vadd.f32 0.0, %v909
    %v911 = vpop.f32.mrb[0].mxu0
    %912 = vmatprep.mubr.f32.mxu0 0.0
    %913 = vmatmul.mubr.f32.gmra.mrb[0].mxu0 %v735
    %v914 = vpop.f32.mrb[0].mxu0
    %v915 = vadd.f32 0.0, %v914
    %v916 = vpop.f32.mrb[0].mxu0
    %917 = vmatprep.mubr.f32.mxu0 0.0
    %918 = vmatmul.mubr.f32.gmra.mrb[0].mxu0 %v738
    %v919 = vpop.f32.mrb[0].mxu0
    %v920 = vadd.f32 0.0, %v919
    %v921 = vpop.f32.mrb[0].mxu0
    %922 = vmatprep.mubr.f32.mxu0 0.0
    %923 = vmatmul.mubr.f32.gmra.mrb[0].mxu0 %v741
    %v924 = vpop.f32.mrb[0].mxu0
    %v925 = vadd.f32 0.0, %v924
    %v926 = vpop.f32.mrb[0].mxu0
    %927 = vmatprep.mubr.f32.mxu0 0.0
    %928 = vmatmul.mubr.f32.gmra.mrb[0].mxu0 %v744
    %v929 = vpop.f32.mrb[0].mxu0
    %v930 = vadd.f32 0.0, %v929
    %v931 = vpop.f32.mrb[0].mxu0
    %932 = vmatprep.mubr.f32.mxu0 0.0
    %933 = vmatmul.mubr.f32.gmra.mrb[0].mxu0 %v747
    %v934 = vpop.f32.mrb[0].mxu0
    %v935 = vadd.f32 0.0, %v934
    %v936 = vpop.f32.mrb[0].mxu0
    %937 = vmatprep.mubr.f32.mxu0 0.0
    %938 = vmatmul.mubr.f32.gmra.mrb[0].mxu0 %v750
    %v939 = vpop.f32.mrb[0].mxu0
    %v940 = vadd.f32 0.0, %v939
    %v941 = vpop.f32.mrb[0].mxu0
    %942 = vmatprep.mubr.f32.mxu0 0.0
    %943 = vmatmul.mubr.f32.gmra.mrb[0].mxu0 %v753
    %v944 = vpop.f32.mrb[0].mxu0
    %v945 = vadd.f32 0.0, %v944
    %v946 = vpop.f32.mrb[0].mxu0
    %947 = vmatprep.mubr.f32.mxu0 0.0
    %948 = vmatmul.mubr.f32.gmra.mrb[0].mxu0 %v756
    %v949 = vpop.f32.mrb[0].mxu0
    %v950 = vadd.f32 0.0, %v949
    %v951 = vpop.f32.mrb[0].mxu0
    %952 = vmatprep.mubr.f32.mxu0 0.0
    %953 = vmatmul.mubr.f32.gmra.mrb[0].mxu0 %v759
    %v954 = vpop.f32.mrb[0].mxu0
    %v955 = vadd.f32 0.0, %v954
    %v956 = vpop.f32.mrb[0].mxu0
    %957 = vmatprep.mubr.f32.mxu0 0.0
    %958 = vmatmul.mubr.f32.gmra.mrb[0].mxu0 %v762
    %v959 = vpop.f32.mrb[0].mxu0
    %v960 = vadd.f32 0.0, %v959
    %v961 = vpop.f32.mrb[0].mxu0
    %962 = vmatprep.mubr.f32.mxu0 0.0
    %963 = vmatmul.mubr.f32.gmra.mrb[0].mxu0 %v765
    %v964 = vpop.f32.mrb[0].mxu0
    %v965 = vadd.f32 0.0, %v964
    %v966 = vpop.f32.mrb[0].mxu0
    %967 = vmatprep.mubr.f32.mxu0 0.0
    %968 = vmatmul.mubr.f32.gmra.mrb[0].mxu0 %v768
    %v969 = vpop.f32.mrb[0].mxu0
    %v970 = vadd.f32 0.0, %v969
    %v971 = vpop.f32.mrb[0].mxu0
    %972 = vmatprep.mubr.f32.mxu0 0.0
    %973 = vmatmul.mubr.f32.gmra.mrb[0].mxu0 %v771
    %v974 = vpop.f32.mrb[0].mxu0
    %v975 = vadd.f32 0.0, %v974
    %v976 = vpop.f32.mrb[0].mxu0
    %977 = vmatprep.mubr.f32.mxu0 0.0
    %978 = vmatmul.mubr.f32.gmra.mrb[0].mxu0 %v774
    %v979 = vpop.f32.mrb[0].mxu0
    %v980 = vadd.f32 0.0, %v979
    %v981 = vpop.f32.mrb[0].mxu0
    %982 = vmatprep.mubr.f32.mxu0 0.0
    %983 = vmatmul.mubr.f32.gmra.mrb[0].mxu0 %v777
    %v984 = vpop.f32.mrb[0].mxu0
    %v985 = vadd.f32 0.0, %v984
    %v986 = vpop.f32.mrb[0].mxu0
    %987 = vmatprep.mubr.f32.mxu0 0.0
    %988 = vmatmul.mubr.f32.gmra.mrb[0].mxu0 %v780
    %v989 = vpop.f32.mrb[0].mxu0
    %v990 = vadd.f32 0.0, %v989
    %v991 = vpop.f32.mrb[0].mxu0
    %992 = vmatprep.mubr.f32.mxu0 0.0
    %993 = vmatmul.mubr.f32.gmra.mrb[0].mxu0 %v783
    %v994 = vpop.f32.mrb[0].mxu0
    %v995 = vadd.f32 0.0, %v994
    %v996 = vpop.f32.mrb[0].mxu0
    %997 = vmatprep.mubr.f32.mxu0 0.0
    %998 = vmatmul.mubr.f32.gmra.mrb[0].mxu0 %v786
    %v999 = vpop.f32.mrb[0].mxu0
    %v1000 = vadd.f32 0.0, %v999
    %v1001 = vpop.f32.mrb[0].mxu0
    %1002 = vmatprep.mubr.f32.mxu0 0.0
    %1003 = vmatmul.mubr.f32.gmra.mrb[0].mxu0 %v789
    %v1004 = vpop.f32.mrb[0].mxu0
    %v1005 = vadd.f32 0.0, %v1004
    %v1006 = vpop.f32.mrb[0].mxu0
    %1007 = vmatprep.mubr.f32.mxu0 0.0
    %1008 = vmatmul.mubr.f32.gmra.mrb[0].mxu0 %v792
    %v1009 = vpop.f32.mrb[0].mxu0
    %v1010 = vadd.f32 0.0, %v1009
    %v1011 = vpop.f32.mrb[0].mxu0
    %1012 = vmatprep.mubr.f32.mxu0 0.0
    %1013 = vmatmul.mubr.f32.gmra.mrb[0].mxu0 %v795
    %v1014 = vpop.f32.mrb[0].mxu0
    %v1015 = vadd.f32 0.0, %v1014
    %v1016 = vpop.f32.mrb[0].mxu0
    %1017 = vmatprep.mubr.f32.mxu0 0.0
    %1018 = vmatmul.mubr.f32.gmra.mrb[0].mxu0 %v798
    %v1019 = vpop.f32.mrb[0].mxu0
    %v1020 = vadd.f32 0.0, %v1019
    %v1021 = vpop.f32.mrb[0].mxu0
    %1022 = vmatprep.mubr.f32.mxu0 0.0
    %1023 = vmatmul.mubr.f32.gmra.mrb[0].mxu0 %v801
    %v1024 = vpop.f32.mrb[0].mxu0
    %v1025 = vadd.f32 0.0, %v1024
    %v1026 = vpop.f32.mrb[0].mxu0
    %1027 = vdwg.mxu0
    %1060 = vrot.lane.b32.xlu0 %v870, 96
    %v1061 = vpop.permute.xlu0 %1060
    %1062 = vrot.lane.b32.xlu0 %v875, 96
    %v1063 = vpop.permute.xlu0 %1062
    %1064 = vrot.lane.b32.xlu0 %v880, 96
    %v1065 = vpop.permute.xlu0 %1064
    %1066 = vrot.lane.b32.xlu0 %v885, 96
    %v1067 = vpop.permute.xlu0 %1066
    %1068 = vrot.lane.b32.xlu0 %v890, 96
    %v1069 = vpop.permute.xlu0 %1068
    %1070 = vrot.lane.b32.xlu0 %v895, 96
    %v1071 = vpop.permute.xlu0 %1070
    %1072 = vrot.lane.b32.xlu0 %v900, 96
    %v1073 = vpop.permute.xlu0 %1072
    %1074 = vrot.lane.b32.xlu0 %v905, 96
    %v1075 = vpop.permute.xlu0 %1074
    %1076 = vrot.lane.b32.xlu0 %v910, 96
    %v1077 = vpop.permute.xlu0 %1076
    %1078 = vrot.lane.b32.xlu0 %v915, 96
    %v1079 = vpop.permute.xlu0 %1078
    %1080 = vrot.lane.b32.xlu0 %v920, 96
    %v1081 = vpop.permute.xlu0 %1080
    %1082 = vrot.lane.b32.xlu0 %v925, 96
    %v1083 = vpop.permute.xlu0 %1082
    %1084 = vrot.lane.b32.xlu0 %v930, 96
    %v1085 = vpop.permute.xlu0 %1084
    %1086 = vrot.lane.b32.xlu0 %v935, 96
    %v1087 = vpop.permute.xlu0 %1086
    %1088 = vrot.lane.b32.xlu0 %v940, 96
    %v1089 = vpop.permute.xlu0 %1088
    %1090 = vrot.lane.b32.xlu0 %v945, 96
    %v1091 = vpop.permute.xlu0 %1090
    %1092 = vrot.lane.b32.xlu0 %v950, 96
    %v1093 = vpop.permute.xlu0 %1092
    %1094 = vrot.lane.b32.xlu0 %v955, 96
    %v1095 = vpop.permute.xlu0 %1094
    %1096 = vrot.lane.b32.xlu0 %v960, 96
    %v1097 = vpop.permute.xlu0 %1096
    %1098 = vrot.lane.b32.xlu0 %v965, 96
    %v1099 = vpop.permute.xlu0 %1098
    %1100 = vrot.lane.b32.xlu0 %v970, 96
    %v1101 = vpop.permute.xlu0 %1100
    %1102 = vrot.lane.b32.xlu0 %v975, 96
    %v1103 = vpop.permute.xlu0 %1102
    %1104 = vrot.lane.b32.xlu0 %v980, 96
    %v1105 = vpop.permute.xlu0 %1104
    %1106 = vrot.lane.b32.xlu0 %v985, 96
    %v1107 = vpop.permute.xlu0 %1106
    %1108 = vrot.lane.b32.xlu0 %v990, 96
    %v1109 = vpop.permute.xlu0 %1108
    %1110 = vrot.lane.b32.xlu0 %v995, 96
    %v1111 = vpop.permute.xlu0 %1110
    %1112 = vrot.lane.b32.xlu0 %v1000, 96
    %v1113 = vpop.permute.xlu0 %1112
    %1114 = vrot.lane.b32.xlu0 %v1005, 96
    %v1115 = vpop.permute.xlu0 %1114
    %1116 = vrot.lane.b32.xlu0 %v1010, 96
    %v1117 = vpop.permute.xlu0 %1116
    %1118 = vrot.lane.b32.xlu0 %v1015, 96
    %v1119 = vpop.permute.xlu0 %1118
    %1120 = vrot.lane.b32.xlu0 %v1020, 96
    %v1121 = vpop.permute.xlu0 %1120
    %1122 = vrot.lane.b32.xlu0 %v1025, 96
    %v1123 = vpop.permute.xlu0 %1122
    %v1156 = vmul.f32 %v870, %v1061
    %v1157 = vmul.f32 %v875, %v1063
    %v1158 = vmul.f32 %v880, %v1065
    %v1159 = vmul.f32 %v885, %v1067
    %v1160 = vmul.f32 %v890, %v1069
    %v1161 = vmul.f32 %v895, %v1071
    %v1162 = vmul.f32 %v900, %v1073
    %v1163 = vmul.f32 %v905, %v1075
    %v1164 = vmul.f32 %v910, %v1077
    %v1165 = vmul.f32 %v915, %v1079
    %v1166 = vmul.f32 %v920, %v1081
    %v1167 = vmul.f32 %v925, %v1083
    %v1168 = vmul.f32 %v930, %v1085
    %v1169 = vmul.f32 %v935, %v1087
    %v1170 = vmul.f32 %v940, %v1089
    %v1171 = vmul.f32 %v945, %v1091
    %v1172 = vmul.f32 %v950, %v1093
    %v1173 = vmul.f32 %v955, %v1095
    %v1174 = vmul.f32 %v960, %v1097
    %v1175 = vmul.f32 %v965, %v1099
    %v1176 = vmul.f32 %v970, %v1101
    %v1177 = vmul.f32 %v975, %v1103
    %v1178 = vmul.f32 %v980, %v1105
    %v1179 = vmul.f32 %v985, %v1107
    %v1180 = vmul.f32 %v990, %v1109
    %v1181 = vmul.f32 %v995, %v1111
    %v1182 = vmul.f32 %v1000, %v1113
    %v1183 = vmul.f32 %v1005, %v1115
    %v1184 = vmul.f32 %v1010, %v1117
    %v1185 = vmul.f32 %v1015, %v1119
    %v1186 = vmul.f32 %v1020, %v1121
    %v1187 = vmul.f32 %v1025, %v1123
    %v1188 = vld [vmem:[%s5] sm:$0xff]
    %v1189 = vld [vmem:[%s5 + $0x8] sm:$0xff]
    %v1190 = vld [vmem:[%s5 + $0x10] sm:$0xff]
    %v1191 = vld [vmem:[%s5 + $0x18] sm:$0xff]
    %v1193 = vsel %vm297, %v1156, 0
    %v1196 = vsel %vm297, %v1157, 0
    %v1199 = vsel %vm297, %v1158, 0
    %v1202 = vsel %vm297, %v1159, 0
    %v1205 = vsel %vm297, %v1160, 0
    %v1208 = vsel %vm297, %v1161, 0
    %v1211 = vsel %vm297, %v1162, 0
    %v1214 = vsel %vm297, %v1163, 0
    %v1217 = vsel %vm297, %v1164, 0
    %v1220 = vsel %vm297, %v1165, 0
    %v1223 = vsel %vm297, %v1166, 0
    %v1226 = vsel %vm297, %v1167, 0
    %v1229 = vsel %vm297, %v1168, 0
    %v1232 = vsel %vm297, %v1169, 0
    %v1235 = vsel %vm297, %v1170, 0
    %v1238 = vsel %vm297, %v1171, 0
    %v1241 = vsel %vm297, %v1172, 0
    %v1244 = vsel %vm297, %v1173, 0
    %v1247 = vsel %vm297, %v1174, 0
    %v1250 = vsel %vm297, %v1175, 0
    %v1253 = vsel %vm297, %v1176, 0
    %v1256 = vsel %vm297, %v1177, 0
    %v1259 = vsel %vm297, %v1178, 0
    %v1262 = vsel %vm297, %v1179, 0
    %v1265 = vsel %vm297, %v1180, 0
    %v1268 = vsel %vm297, %v1181, 0
    %v1271 = vsel %vm297, %v1182, 0
    %v1274 = vsel %vm297, %v1183, 0
    %v1277 = vsel %vm297, %v1184, 0
    %v1280 = vsel %vm297, %v1185, 0
    %v1283 = vsel %vm297, %v1186, 0
    %v1286 = vsel %vm297, %v1187, 0
    %1288 = vmatprep.subr.mxu0 0.0
    %1289 = vmatpush1.msra.mxu0 %v1188
    %1290 = vmatprep.subr.mxu0 0.0
    %1291 = vmatpush1.msra.mxu0 %v1189
    %1292 = vmatprep.subr.mxu0 0.0
    %1293 = vmatpush1.msra.mxu0 %v1190
    %1294 = vmatprep.subr.mxu0 0.0
    %1295 = vmatpush1.msra.mxu0 %v1191
    %1296 = vmatprep.subr.mxu0 0.0
    %1297 = vmatpush1.msra.mxu0 0.0
    %1298 = vmatprep.subr.mxu0 0.0
    %1299 = vmatpush1.msra.mxu0 0.0
    %1300 = vmatprep.subr.mxu0 0.0
    %1301 = vmatpush1.msra.mxu0 0.0
    %1302 = vmatprep.subr.mxu0 0.0
    %1303 = vmatpush1.msra.mxu0 0.0
    %1304 = vmatprep.subr.mxu0 0.0
    %1305 = vmatpush1.msra.mxu0 0.0
    %1306 = vmatprep.subr.mxu0 0.0
    %1307 = vmatpush1.msra.mxu0 0.0
    %1308 = vmatprep.subr.mxu0 0.0
    %1309 = vmatpush1.msra.mxu0 0.0
    %1310 = vmatprep.subr.mxu0 0.0
    %1311 = vmatpush1.msra.mxu0 0.0
    %1312 = vmatprep.subr.mxu0 0.0
    %1313 = vmatpush1.msra.mxu0 0.0
    %1314 = vmatprep.subr.mxu0 0.0
    %1315 = vmatpush1.msra.mxu0 0.0
    %1316 = vmatprep.subr.mxu0 0.0
    %1317 = vmatpush1.msra.mxu0 0.0
    %1318 = vmatprep.subr.mxu0 0.0
    %1319 = vmatpush1.msra.mxu0 0.0
    %1320 = vmatprep.subr.mxu0 0.0
    %1321 = vmatpush1.msra.mxu0 0.0
    %1322 = vmatprep.subr.mxu0 0.0
    %1323 = vmatpush1.msra.mxu0 0.0
    %1324 = vmatprep.subr.mxu0 0.0
    %1325 = vmatpush1.msra.mxu0 0.0
    %1326 = vmatprep.subr.mxu0 0.0
    %1327 = vmatpush1.msra.mxu0 0.0
    %1328 = vmatprep.subr.mxu0 0.0
    %1329 = vmatpush1.msra.mxu0 0.0
    %1330 = vmatprep.subr.mxu0 0.0
    %1331 = vmatpush1.msra.mxu0 0.0
    %1332 = vmatprep.subr.mxu0 0.0
    %1333 = vmatpush1.msra.mxu0 0.0
    %1334 = vmatprep.subr.mxu0 0.0
    %1335 = vmatpush1.msra.mxu0 0.0
    %1336 = vmatprep.subr.mxu0 0.0
    %1337 = vmatpush1.msra.mxu0 0.0
    %1338 = vmatprep.subr.mxu0 0.0
    %1339 = vmatpush1.msra.mxu0 0.0
    %1340 = vmatprep.subr.mxu0 0.0
    %1341 = vmatpush1.msra.mxu0 0.0
    %1342 = vmatprep.subr.mxu0 0.0
    %1343 = vmatpush1.msra.mxu0 0.0
    %1344 = vmatprep.subr.mxu0 0.0
    %1345 = vmatpush1.msra.mxu0 0.0
    %1346 = vmatprep.subr.mxu0 0.0
    %1347 = vmatpush1.msra.mxu0 0.0
    %1348 = vmatprep.subr.mxu0 0.0
    %1349 = vmatpush1.msra.mxu0 0.0
    %1350 = vmatprep.subr.mxu0 0.0
    %1351 = vmatpush1.msra.mxu0 0.0
    %1352 = vmatprep.mubr.f32.mxu0 0.0
    %1353 = vmatmul.mubr.f32.gmra.mrb[0].mxu0 %v1193
    %v1354 = vpop.f32.mrb[0].mxu0
    %v1355 = vadd.f32 0.0, %v1354
    %v1356 = vpop.f32.mrb[0].mxu0
    %1357 = vmatprep.mubr.f32.mxu0 0.0
    %1358 = vmatmul.mubr.f32.gmra.mrb[0].mxu0 %v1196
    %v1359 = vpop.f32.mrb[0].mxu0
    %v1360 = vadd.f32 0.0, %v1359
    %v1361 = vpop.f32.mrb[0].mxu0
    %1362 = vmatprep.mubr.f32.mxu0 0.0
    %1363 = vmatmul.mubr.f32.gmra.mrb[0].mxu0 %v1199
    %v1364 = vpop.f32.mrb[0].mxu0
    %v1365 = vadd.f32 0.0, %v1364
    %v1366 = vpop.f32.mrb[0].mxu0
    %1367 = vmatprep.mubr.f32.mxu0 0.0
    %1368 = vmatmul.mubr.f32.gmra.mrb[0].mxu0 %v1202
    %v1369 = vpop.f32.mrb[0].mxu0
    %v1370 = vadd.f32 0.0, %v1369
    %v1371 = vpop.f32.mrb[0].mxu0
    %1372 = vmatprep.mubr.f32.mxu0 0.0
    %1373 = vmatmul.mubr.f32.gmra.mrb[0].mxu0 %v1205
    %v1374 = vpop.f32.mrb[0].mxu0
    %v1375 = vadd.f32 0.0, %v1374
    %v1376 = vpop.f32.mrb[0].mxu0
    %1377 = vmatprep.mubr.f32.mxu0 0.0
    %1378 = vmatmul.mubr.f32.gmra.mrb[0].mxu0 %v1208
    %v1379 = vpop.f32.mrb[0].mxu0
    %v1380 = vadd.f32 0.0, %v1379
    %v1381 = vpop.f32.mrb[0].mxu0
    %1382 = vmatprep.mubr.f32.mxu0 0.0
    %1383 = vmatmul.mubr.f32.gmra.mrb[0].mxu0 %v1211
    %v1384 = vpop.f32.mrb[0].mxu0
    %v1385 = vadd.f32 0.0, %v1384
    %v1386 = vpop.f32.mrb[0].mxu0
    %1387 = vmatprep.mubr.f32.mxu0 0.0
    %1388 = vmatmul.mubr.f32.gmra.mrb[0].mxu0 %v1214
    %v1389 = vpop.f32.mrb[0].mxu0
    %v1390 = vadd.f32 0.0, %v1389
    %v1391 = vpop.f32.mrb[0].mxu0
    %1392 = vmatprep.mubr.f32.mxu0 0.0
    %1393 = vmatmul.mubr.f32.gmra.mrb[0].mxu0 %v1217
    %v1394 = vpop.f32.mrb[0].mxu0
    %v1395 = vadd.f32 0.0, %v1394
    %v1396 = vpop.f32.mrb[0].mxu0
    %1397 = vmatprep.mubr.f32.mxu0 0.0
    %1398 = vmatmul.mubr.f32.gmra.mrb[0].mxu0 %v1220
    %v1399 = vpop.f32.mrb[0].mxu0
    %v1400 = vadd.f32 0.0, %v1399
    %v1401 = vpop.f32.mrb[0].mxu0
    %1402 = vmatprep.mubr.f32.mxu0 0.0
    %1403 = vmatmul.mubr.f32.gmra.mrb[0].mxu0 %v1223
    %v1404 = vpop.f32.mrb[0].mxu0
    %v1405 = vadd.f32 0.0, %v1404
    %v1406 = vpop.f32.mrb[0].mxu0
    %1407 = vmatprep.mubr.f32.mxu0 0.0
    %1408 = vmatmul.mubr.f32.gmra.mrb[0].mxu0 %v1226
    %v1409 = vpop.f32.mrb[0].mxu0
    %v1410 = vadd.f32 0.0, %v1409
    %v1411 = vpop.f32.mrb[0].mxu0
    %1412 = vmatprep.mubr.f32.mxu0 0.0
    %1413 = vmatmul.mubr.f32.gmra.mrb[0].mxu0 %v1229
    %v1414 = vpop.f32.mrb[0].mxu0
    %v1415 = vadd.f32 0.0, %v1414
    %v1416 = vpop.f32.mrb[0].mxu0
    %1417 = vmatprep.mubr.f32.mxu0 0.0
    %1418 = vmatmul.mubr.f32.gmra.mrb[0].mxu0 %v1232
    %v1419 = vpop.f32.mrb[0].mxu0
    %v1420 = vadd.f32 0.0, %v1419
    %v1421 = vpop.f32.mrb[0].mxu0
    %1422 = vmatprep.mubr.f32.mxu0 0.0
    %1423 = vmatmul.mubr.f32.gmra.mrb[0].mxu0 %v1235
    %v1424 = vpop.f32.mrb[0].mxu0
    %v1425 = vadd.f32 0.0, %v1424
    %v1426 = vpop.f32.mrb[0].mxu0
    %1427 = vmatprep.mubr.f32.mxu0 0.0
    %1428 = vmatmul.mubr.f32.gmra.mrb[0].mxu0 %v1238
    %v1429 = vpop.f32.mrb[0].mxu0
    %v1430 = vadd.f32 0.0, %v1429
    %v1431 = vpop.f32.mrb[0].mxu0
    %1432 = vmatprep.mubr.f32.mxu0 0.0
    %1433 = vmatmul.mubr.f32.gmra.mrb[0].mxu0 %v1241
    %v1434 = vpop.f32.mrb[0].mxu0
    %v1435 = vadd.f32 0.0, %v1434
    %v1436 = vpop.f32.mrb[0].mxu0
    %1437 = vmatprep.mubr.f32.mxu0 0.0
    %1438 = vmatmul.mubr.f32.gmra.mrb[0].mxu0 %v1244
    %v1439 = vpop.f32.mrb[0].mxu0
    %v1440 = vadd.f32 0.0, %v1439
    %v1441 = vpop.f32.mrb[0].mxu0
    %1442 = vmatprep.mubr.f32.mxu0 0.0
    %1443 = vmatmul.mubr.f32.gmra.mrb[0].mxu0 %v1247
    %v1444 = vpop.f32.mrb[0].mxu0
    %v1445 = vadd.f32 0.0, %v1444
    %v1446 = vpop.f32.mrb[0].mxu0
    %1447 = vmatprep.mubr.f32.mxu0 0.0
    %1448 = vmatmul.mubr.f32.gmra.mrb[0].mxu0 %v1250
    %v1449 = vpop.f32.mrb[0].mxu0
    %v1450 = vadd.f32 0.0, %v1449
    %v1451 = vpop.f32.mrb[0].mxu0
    %1452 = vmatprep.mubr.f32.mxu0 0.0
    %1453 = vmatmul.mubr.f32.gmra.mrb[0].mxu0 %v1253
    %v1454 = vpop.f32.mrb[0].mxu0
    %v1455 = vadd.f32 0.0, %v1454
    %v1456 = vpop.f32.mrb[0].mxu0
    %1457 = vmatprep.mubr.f32.mxu0 0.0
    %1458 = vmatmul.mubr.f32.gmra.mrb[0].mxu0 %v1256
    %v1459 = vpop.f32.mrb[0].mxu0
    %v1460 = vadd.f32 0.0, %v1459
    %v1461 = vpop.f32.mrb[0].mxu0
    %1462 = vmatprep.mubr.f32.mxu0 0.0
    %1463 = vmatmul.mubr.f32.gmra.mrb[0].mxu0 %v1259
    %v1464 = vpop.f32.mrb[0].mxu0
    %v1465 = vadd.f32 0.0, %v1464
    %v1466 = vpop.f32.mrb[0].mxu0
    %1467 = vmatprep.mubr.f32.mxu0 0.0
    %1468 = vmatmul.mubr.f32.gmra.mrb[0].mxu0 %v1262
    %v1469 = vpop.f32.mrb[0].mxu0
    %v1470 = vadd.f32 0.0, %v1469
    %v1471 = vpop.f32.mrb[0].mxu0
    %1472 = vmatprep.mubr.f32.mxu0 0.0
    %1473 = vmatmul.mubr.f32.gmra.mrb[0].mxu0 %v1265
    %v1474 = vpop.f32.mrb[0].mxu0
    %v1475 = vadd.f32 0.0, %v1474
    %v1476 = vpop.f32.mrb[0].mxu0
    %1477 = vmatprep.mubr.f32.mxu0 0.0
    %1478 = vmatmul.mubr.f32.gmra.mrb[0].mxu0 %v1268
    %v1479 = vpop.f32.mrb[0].mxu0
    %v1480 = vadd.f32 0.0, %v1479
    %v1481 = vpop.f32.mrb[0].mxu0
    %1482 = vmatprep.mubr.f32.mxu0 0.0
    %1483 = vmatmul.mubr.f32.gmra.mrb[0].mxu0 %v1271
    %v1484 = vpop.f32.mrb[0].mxu0
    %v1485 = vadd.f32 0.0, %v1484
    %v1486 = vpop.f32.mrb[0].mxu0
    %1487 = vmatprep.mubr.f32.mxu0 0.0
    %1488 = vmatmul.mubr.f32.gmra.mrb[0].mxu0 %v1274
    %v1489 = vpop.f32.mrb[0].mxu0
    %v1490 = vadd.f32 0.0, %v1489
    %v1491 = vpop.f32.mrb[0].mxu0
    %1492 = vmatprep.mubr.f32.mxu0 0.0
    %1493 = vmatmul.mubr.f32.gmra.mrb[0].mxu0 %v1277
    %v1494 = vpop.f32.mrb[0].mxu0
    %v1495 = vadd.f32 0.0, %v1494
    %v1496 = vpop.f32.mrb[0].mxu0
    %1497 = vmatprep.mubr.f32.mxu0 0.0
    %1498 = vmatmul.mubr.f32.gmra.mrb[0].mxu0 %v1280
    %v1499 = vpop.f32.mrb[0].mxu0
    %v1500 = vadd.f32 0.0, %v1499
    %v1501 = vpop.f32.mrb[0].mxu0
    %1502 = vmatprep.mubr.f32.mxu0 0.0
    %1503 = vmatmul.mubr.f32.gmra.mrb[0].mxu0 %v1283
    %v1504 = vpop.f32.mrb[0].mxu0
    %v1505 = vadd.f32 0.0, %v1504
    %v1506 = vpop.f32.mrb[0].mxu0
    %1507 = vmatprep.mubr.f32.mxu0 0.0
    %1508 = vmatmul.mubr.f32.gmra.mrb[0].mxu0 %v1286
    %v1509 = vpop.f32.mrb[0].mxu0
    %v1510 = vadd.f32 0.0, %v1509
    %v1511 = vpop.f32.mrb[0].mxu0
    %1512 = vdwg.mxu0
    %vm1513 = vcmask 31744
    %v1514 = vsel %vm1513, %v1355, -inf
    %1515 = vmax.xlane.f32.xlu0 %v1514
    %v1516 = vpop.xlane.xlu0 %1515
    %v1517 = vsel %vm1513, %v1360, -inf
    %1518 = vmax.xlane.f32.xlu0 %v1517
    %v1519 = vpop.xlane.xlu0 %1518
    %v1520 = vsel %vm1513, %v1365, -inf
    %1521 = vmax.xlane.f32.xlu0 %v1520
    %v1522 = vpop.xlane.xlu0 %1521
    %v1523 = vsel %vm1513, %v1370, -inf
    %1524 = vmax.xlane.f32.xlu0 %v1523
    %v1525 = vpop.xlane.xlu0 %1524
    %v1526 = vsel %vm1513, %v1375, -inf
    %1527 = vmax.xlane.f32.xlu0 %v1526
    %v1528 = vpop.xlane.xlu0 %1527
    %v1529 = vsel %vm1513, %v1380, -inf
    %1530 = vmax.xlane.f32.xlu0 %v1529
    %v1531 = vpop.xlane.xlu0 %1530
    %v1532 = vsel %vm1513, %v1385, -inf
    %1533 = vmax.xlane.f32.xlu0 %v1532
    %v1534 = vpop.xlane.xlu0 %1533
    %v1535 = vsel %vm1513, %v1390, -inf
    %1536 = vmax.xlane.f32.xlu0 %v1535
    %v1537 = vpop.xlane.xlu0 %1536
    %v1538 = vsel %vm1513, %v1395, -inf
    %1539 = vmax.xlane.f32.xlu0 %v1538
    %v1540 = vpop.xlane.xlu0 %1539
    %v1541 = vsel %vm1513, %v1400, -inf
    %1542 = vmax.xlane.f32.xlu0 %v1541
    %v1543 = vpop.xlane.xlu0 %1542
    %v1544 = vsel %vm1513, %v1405, -inf
    %1545 = vmax.xlane.f32.xlu0 %v1544
    %v1546 = vpop.xlane.xlu0 %1545
    %v1547 = vsel %vm1513, %v1410, -inf
    %1548 = vmax.xlane.f32.xlu0 %v1547
    %v1549 = vpop.xlane.xlu0 %1548
    %v1550 = vsel %vm1513, %v1415, -inf
    %1551 = vmax.xlane.f32.xlu0 %v1550
    %v1552 = vpop.xlane.xlu0 %1551
    %v1553 = vsel %vm1513, %v1420, -inf
    %1554 = vmax.xlane.f32.xlu0 %v1553
    %v1555 = vpop.xlane.xlu0 %1554
    %v1556 = vsel %vm1513, %v1425, -inf
    %1557 = vmax.xlane.f32.xlu0 %v1556
    %v1558 = vpop.xlane.xlu0 %1557
    %v1559 = vsel %vm1513, %v1430, -inf
    %1560 = vmax.xlane.f32.xlu0 %v1559
    %v1561 = vpop.xlane.xlu0 %1560
    %v1562 = vsel %vm1513, %v1435, -inf
    %1563 = vmax.xlane.f32.xlu0 %v1562
    %v1564 = vpop.xlane.xlu0 %1563
    %v1565 = vsel %vm1513, %v1440, -inf
    %1566 = vmax.xlane.f32.xlu0 %v1565
    %v1567 = vpop.xlane.xlu0 %1566
    %v1568 = vsel %vm1513, %v1445, -inf
    %1569 = vmax.xlane.f32.xlu0 %v1568
    %v1570 = vpop.xlane.xlu0 %1569
    %v1571 = vsel %vm1513, %v1450, -inf
    %1572 = vmax.xlane.f32.xlu0 %v1571
    %v1573 = vpop.xlane.xlu0 %1572
    %v1574 = vsel %vm1513, %v1455, -inf
    %1575 = vmax.xlane.f32.xlu0 %v1574
    %v1576 = vpop.xlane.xlu0 %1575
    %v1577 = vsel %vm1513, %v1460, -inf
    %1578 = vmax.xlane.f32.xlu0 %v1577
    %v1579 = vpop.xlane.xlu0 %1578
    %v1580 = vsel %vm1513, %v1465, -inf
    %1581 = vmax.xlane.f32.xlu0 %v1580
    %v1582 = vpop.xlane.xlu0 %1581
    %v1583 = vsel %vm1513, %v1470, -inf
    %1584 = vmax.xlane.f32.xlu0 %v1583
    %v1585 = vpop.xlane.xlu0 %1584
    %v1586 = vsel %vm1513, %v1475, -inf
    %1587 = vmax.xlane.f32.xlu0 %v1586
    %v1588 = vpop.xlane.xlu0 %1587
    %v1589 = vsel %vm1513, %v1480, -inf
    %1590 = vmax.xlane.f32.xlu0 %v1589
    %v1591 = vpop.xlane.xlu0 %1590
    %v1592 = vsel %vm1513, %v1485, -inf
    %1593 = vmax.xlane.f32.xlu0 %v1592
    %v1594 = vpop.xlane.xlu0 %1593
    %v1595 = vsel %vm1513, %v1490, -inf
    %1596 = vmax.xlane.f32.xlu0 %v1595
    %v1597 = vpop.xlane.xlu0 %1596
    %v1598 = vsel %vm1513, %v1495, -inf
    %1599 = vmax.xlane.f32.xlu0 %v1598
    %v1600 = vpop.xlane.xlu0 %1599
    %v1601 = vsel %vm1513, %v1500, -inf
    %1602 = vmax.xlane.f32.xlu0 %v1601
    %v1603 = vpop.xlane.xlu0 %1602
    %v1604 = vsel %vm1513, %v1505, -inf
    %1605 = vmax.xlane.f32.xlu0 %v1604
    %v1606 = vpop.xlane.xlu0 %1605
    %v1607 = vsel %vm1513, %v1510, -inf
    %1608 = vmax.xlane.f32.xlu0 %v1607
    %v1609 = vpop.xlane.xlu0 %1608
    %v1610 = vsub.f32 %v1355, %v1516
    %v1611 = vsub.f32 %v1360, %v1519
    %v1612 = vsub.f32 %v1365, %v1522
    %v1613 = vsub.f32 %v1370, %v1525
    %v1614 = vsub.f32 %v1375, %v1528
    %v1615 = vsub.f32 %v1380, %v1531
    %v1616 = vsub.f32 %v1385, %v1534
    %v1617 = vsub.f32 %v1390, %v1537
    %v1618 = vsub.f32 %v1395, %v1540
    %v1619 = vsub.f32 %v1400, %v1543
    %v1620 = vsub.f32 %v1405, %v1546
    %v1621 = vsub.f32 %v1410, %v1549
    %v1622 = vsub.f32 %v1415, %v1552
    %v1623 = vsub.f32 %v1420, %v1555
    %v1624 = vsub.f32 %v1425, %v1558
    %v1625 = vsub.f32 %v1430, %v1561
    %v1626 = vsub.f32 %v1435, %v1564
    %v1627 = vsub.f32 %v1440, %v1567
    %v1628 = vsub.f32 %v1445, %v1570
    %v1629 = vsub.f32 %v1450, %v1573
    %v1630 = vsub.f32 %v1455, %v1576
    %v1631 = vsub.f32 %v1460, %v1579
    %v1632 = vsub.f32 %v1465, %v1582
    %v1633 = vsub.f32 %v1470, %v1585
    %v1634 = vsub.f32 %v1475, %v1588
    %v1635 = vsub.f32 %v1480, %v1591
    %v1636 = vsub.f32 %v1485, %v1594
    %v1637 = vsub.f32 %v1490, %v1597
    %v1638 = vsub.f32 %v1495, %v1600
    %v1639 = vsub.f32 %v1500, %v1603
    %v1640 = vsub.f32 %v1505, %v1606
    %v1641 = vsub.f32 %v1510, %v1609
    %v1642 = vmul.f32 %v1610, 1.442695
    %v1643 = vpow.pop %v1642
    %v1644 = vmul.f32 %v1611, 1.442695
    %v1645 = vpow.pop %v1644
    %v1646 = vmul.f32 %v1612, 1.442695
    %v1647 = vpow.pop %v1646
    %v1648 = vmul.f32 %v1613, 1.442695
    %v1649 = vpow.pop %v1648
    %v1650 = vmul.f32 %v1614, 1.442695
    %v1651 = vpow.pop %v1650
    %v1652 = vmul.f32 %v1615, 1.442695
    %v1653 = vpow.pop %v1652
    %v1654 = vmul.f32 %v1616, 1.442695
    %v1655 = vpow.pop %v1654
    %v1656 = vmul.f32 %v1617, 1.442695
    %v1657 = vpow.pop %v1656
    %v1658 = vmul.f32 %v1618, 1.442695
    %v1659 = vpow.pop %v1658
    %v1660 = vmul.f32 %v1619, 1.442695
    %v1661 = vpow.pop %v1660
    %v1662 = vmul.f32 %v1620, 1.442695
    %v1663 = vpow.pop %v1662
    %v1664 = vmul.f32 %v1621, 1.442695
    %v1665 = vpow.pop %v1664
    %v1666 = vmul.f32 %v1622, 1.442695
    %v1667 = vpow.pop %v1666
    %v1668 = vmul.f32 %v1623, 1.442695
    %v1669 = vpow.pop %v1668
    %v1670 = vmul.f32 %v1624, 1.442695
    %v1671 = vpow.pop %v1670
    %v1672 = vmul.f32 %v1625, 1.442695
    %v1673 = vpow.pop %v1672
    %v1674 = vmul.f32 %v1626, 1.442695
    %v1675 = vpow.pop %v1674
    %v1676 = vmul.f32 %v1627, 1.442695
    %v1677 = vpow.pop %v1676
    %v1678 = vmul.f32 %v1628, 1.442695
    %v1679 = vpow.pop %v1678
    %v1680 = vmul.f32 %v1629, 1.442695
    %v1681 = vpow.pop %v1680
    %v1682 = vmul.f32 %v1630, 1.442695
    %v1683 = vpow.pop %v1682
    %v1684 = vmul.f32 %v1631, 1.442695
    %v1685 = vpow.pop %v1684
    %v1686 = vmul.f32 %v1632, 1.442695
    %v1687 = vpow.pop %v1686
    %v1688 = vmul.f32 %v1633, 1.442695
    %v1689 = vpow.pop %v1688
    %v1690 = vmul.f32 %v1634, 1.442695
    %v1691 = vpow.pop %v1690
    %v1692 = vmul.f32 %v1635, 1.442695
    %v1693 = vpow.pop %v1692
    %v1694 = vmul.f32 %v1636, 1.442695
    %v1695 = vpow.pop %v1694
    %v1696 = vmul.f32 %v1637, 1.442695
    %v1697 = vpow.pop %v1696
    %v1698 = vmul.f32 %v1638, 1.442695
    %v1699 = vpow.pop %v1698
    %v1700 = vmul.f32 %v1639, 1.442695
    %v1701 = vpow.pop %v1700
    %v1702 = vmul.f32 %v1640, 1.442695
    %v1703 = vpow.pop %v1702
    %v1704 = vmul.f32 %v1641, 1.442695
    %v1705 = vpow.pop %v1704
    %v1706 = vsel %vm1513, %v1643, 0.0
    %1707 = vadd.xlane.f32.xlu0 %v1706
    %v1708 = vpop.xlane.xlu0 %1707
    %v1709 = vsel %vm1513, %v1645, 0.0
    %1710 = vadd.xlane.f32.xlu0 %v1709
    %v1711 = vpop.xlane.xlu0 %1710
    %v1712 = vsel %vm1513, %v1647, 0.0
    %1713 = vadd.xlane.f32.xlu0 %v1712
    %v1714 = vpop.xlane.xlu0 %1713
    %v1715 = vsel %vm1513, %v1649, 0.0
    %1716 = vadd.xlane.f32.xlu0 %v1715
    %v1717 = vpop.xlane.xlu0 %1716
    %v1718 = vsel %vm1513, %v1651, 0.0
    %1719 = vadd.xlane.f32.xlu0 %v1718
    %v1720 = vpop.xlane.xlu0 %1719
    %v1721 = vsel %vm1513, %v1653, 0.0
    %1722 = vadd.xlane.f32.xlu0 %v1721
    %v1723 = vpop.xlane.xlu0 %1722
    %v1724 = vsel %vm1513, %v1655, 0.0
    %1725 = vadd.xlane.f32.xlu0 %v1724
    %v1726 = vpop.xlane.xlu0 %1725
    %v1727 = vsel %vm1513, %v1657, 0.0
    %1728 = vadd.xlane.f32.xlu0 %v1727
    %v1729 = vpop.xlane.xlu0 %1728
    %v1730 = vsel %vm1513, %v1659, 0.0
    %1731 = vadd.xlane.f32.xlu0 %v1730
    %v1732 = vpop.xlane.xlu0 %1731
    %v1733 = vsel %vm1513, %v1661, 0.0
    %1734 = vadd.xlane.f32.xlu0 %v1733
    %v1735 = vpop.xlane.xlu0 %1734
    %v1736 = vsel %vm1513, %v1663, 0.0
    %1737 = vadd.xlane.f32.xlu0 %v1736
    %v1738 = vpop.xlane.xlu0 %1737
    %v1739 = vsel %vm1513, %v1665, 0.0
    %1740 = vadd.xlane.f32.xlu0 %v1739
    %v1741 = vpop.xlane.xlu0 %1740
    %v1742 = vsel %vm1513, %v1667, 0.0
    %1743 = vadd.xlane.f32.xlu0 %v1742
    %v1744 = vpop.xlane.xlu0 %1743
    %v1745 = vsel %vm1513, %v1669, 0.0
    %1746 = vadd.xlane.f32.xlu0 %v1745
    %v1747 = vpop.xlane.xlu0 %1746
    %v1748 = vsel %vm1513, %v1671, 0.0
    %1749 = vadd.xlane.f32.xlu0 %v1748
    %v1750 = vpop.xlane.xlu0 %1749
    %v1751 = vsel %vm1513, %v1673, 0.0
    %1752 = vadd.xlane.f32.xlu0 %v1751
    %v1753 = vpop.xlane.xlu0 %1752
    %v1754 = vsel %vm1513, %v1675, 0.0
    %1755 = vadd.xlane.f32.xlu0 %v1754
    %v1756 = vpop.xlane.xlu0 %1755
    %v1757 = vsel %vm1513, %v1677, 0.0
    %1758 = vadd.xlane.f32.xlu0 %v1757
    %v1759 = vpop.xlane.xlu0 %1758
    %v1760 = vsel %vm1513, %v1679, 0.0
    %1761 = vadd.xlane.f32.xlu0 %v1760
    %v1762 = vpop.xlane.xlu0 %1761
    %v1763 = vsel %vm1513, %v1681, 0.0
    %1764 = vadd.xlane.f32.xlu0 %v1763
    %v1765 = vpop.xlane.xlu0 %1764
    %v1766 = vsel %vm1513, %v1683, 0.0
    %1767 = vadd.xlane.f32.xlu0 %v1766
    %v1768 = vpop.xlane.xlu0 %1767
    %v1769 = vsel %vm1513, %v1685, 0.0
    %1770 = vadd.xlane.f32.xlu0 %v1769
    %v1771 = vpop.xlane.xlu0 %1770
    %v1772 = vsel %vm1513, %v1687, 0.0
    %1773 = vadd.xlane.f32.xlu0 %v1772
    %v1774 = vpop.xlane.xlu0 %1773
    %v1775 = vsel %vm1513, %v1689, 0.0
    %1776 = vadd.xlane.f32.xlu0 %v1775
    %v1777 = vpop.xlane.xlu0 %1776
    %v1778 = vsel %vm1513, %v1691, 0.0
    %1779 = vadd.xlane.f32.xlu0 %v1778
    %v1780 = vpop.xlane.xlu0 %1779
    %v1781 = vsel %vm1513, %v1693, 0.0
    %1782 = vadd.xlane.f32.xlu0 %v1781
    %v1783 = vpop.xlane.xlu0 %1782
    %v1784 = vsel %vm1513, %v1695, 0.0
    %1785 = vadd.xlane.f32.xlu0 %v1784
    %v1786 = vpop.xlane.xlu0 %1785
    %v1787 = vsel %vm1513, %v1697, 0.0
    %1788 = vadd.xlane.f32.xlu0 %v1787
    %v1789 = vpop.xlane.xlu0 %1788
    %v1790 = vsel %vm1513, %v1699, 0.0
    %1791 = vadd.xlane.f32.xlu0 %v1790
    %v1792 = vpop.xlane.xlu0 %1791
    %v1793 = vsel %vm1513, %v1701, 0.0
    %1794 = vadd.xlane.f32.xlu0 %v1793
    %v1795 = vpop.xlane.xlu0 %1794
    %v1796 = vsel %vm1513, %v1703, 0.0
    %1797 = vadd.xlane.f32.xlu0 %v1796
    %v1798 = vpop.xlane.xlu0 %1797
    %v1799 = vsel %vm1513, %v1705, 0.0
    %1800 = vadd.xlane.f32.xlu0 %v1799
    %v1801 = vpop.xlane.xlu0 %1800
    %v1802 = vrcp.pop %v1708
    %v1803 = vrcp.pop %v1711
    %v1804 = vrcp.pop %v1714
    %v1805 = vrcp.pop %v1717
    %v1806 = vrcp.pop %v1720
    %v1807 = vrcp.pop %v1723
    %v1808 = vrcp.pop %v1726
    %v1809 = vrcp.pop %v1729
    %v1810 = vrcp.pop %v1732
    %v1811 = vrcp.pop %v1735
    %v1812 = vrcp.pop %v1738
    %v1813 = vrcp.pop %v1741
    %v1814 = vrcp.pop %v1744
    %v1815 = vrcp.pop %v1747
    %v1816 = vrcp.pop %v1750
    %v1817 = vrcp.pop %v1753
    %v1818 = vrcp.pop %v1756
    %v1819 = vrcp.pop %v1759
    %v1820 = vrcp.pop %v1762
    %v1821 = vrcp.pop %v1765
    %v1822 = vrcp.pop %v1768
    %v1823 = vrcp.pop %v1771
    %v1824 = vrcp.pop %v1774
    %v1825 = vrcp.pop %v1777
    %v1826 = vrcp.pop %v1780
    %v1827 = vrcp.pop %v1783
    %v1828 = vrcp.pop %v1786
    %v1829 = vrcp.pop %v1789
    %v1830 = vrcp.pop %v1792
    %v1831 = vrcp.pop %v1795
    %v1832 = vrcp.pop %v1798
    %v1833 = vrcp.pop %v1801
    %v1834 = vmul.f32 %v1643, %v1802
    %v1835 = vmul.f32 %v1645, %v1803
    %v1836 = vmul.f32 %v1647, %v1804
    %v1837 = vmul.f32 %v1649, %v1805
    %v1838 = vmul.f32 %v1651, %v1806
    %v1839 = vmul.f32 %v1653, %v1807
    %v1840 = vmul.f32 %v1655, %v1808
    %v1841 = vmul.f32 %v1657, %v1809
    %v1842 = vmul.f32 %v1659, %v1810
    %v1843 = vmul.f32 %v1661, %v1811
    %v1844 = vmul.f32 %v1663, %v1812
    %v1845 = vmul.f32 %v1665, %v1813
    %v1846 = vmul.f32 %v1667, %v1814
    %v1847 = vmul.f32 %v1669, %v1815
    %v1848 = vmul.f32 %v1671, %v1816
    %v1849 = vmul.f32 %v1673, %v1817
    %v1850 = vmul.f32 %v1675, %v1818
    %v1851 = vmul.f32 %v1677, %v1819
    %v1852 = vmul.f32 %v1679, %v1820
    %v1853 = vmul.f32 %v1681, %v1821
    %v1854 = vmul.f32 %v1683, %v1822
    %v1855 = vmul.f32 %v1685, %v1823
    %v1856 = vmul.f32 %v1687, %v1824
    %v1857 = vmul.f32 %v1689, %v1825
    %v1858 = vmul.f32 %v1691, %v1826
    %v1859 = vmul.f32 %v1693, %v1827
    %v1860 = vmul.f32 %v1695, %v1828
    %v1861 = vmul.f32 %v1697, %v1829
    %v1862 = vmul.f32 %v1699, %v1830
    %v1863 = vmul.f32 %v1701, %v1831
    %v1864 = vmul.f32 %v1703, %v1832
    %v1865 = vmul.f32 %v1705, %v1833
    %v1866 = vld [vmem:[%s6] sm:$0xf]
    %v1868 = vsel %vm1513, %v1834, 0
    %v1871 = vsel %vm1513, %v1835, 0
    %v1874 = vsel %vm1513, %v1836, 0
    %v1877 = vsel %vm1513, %v1837, 0
    %v1880 = vsel %vm1513, %v1838, 0
    %v1883 = vsel %vm1513, %v1839, 0
    %v1886 = vsel %vm1513, %v1840, 0
    %v1889 = vsel %vm1513, %v1841, 0
    %v1892 = vsel %vm1513, %v1842, 0
    %v1895 = vsel %vm1513, %v1843, 0
    %v1898 = vsel %vm1513, %v1844, 0
    %v1901 = vsel %vm1513, %v1845, 0
    %v1904 = vsel %vm1513, %v1846, 0
    %v1907 = vsel %vm1513, %v1847, 0
    %v1910 = vsel %vm1513, %v1848, 0
    %v1913 = vsel %vm1513, %v1849, 0
    %v1916 = vsel %vm1513, %v1850, 0
    %v1919 = vsel %vm1513, %v1851, 0
    %v1922 = vsel %vm1513, %v1852, 0
    %v1925 = vsel %vm1513, %v1853, 0
    %v1928 = vsel %vm1513, %v1854, 0
    %v1931 = vsel %vm1513, %v1855, 0
    %v1934 = vsel %vm1513, %v1856, 0
    %v1937 = vsel %vm1513, %v1857, 0
    %v1940 = vsel %vm1513, %v1858, 0
    %v1943 = vsel %vm1513, %v1859, 0
    %v1946 = vsel %vm1513, %v1860, 0
    %v1949 = vsel %vm1513, %v1861, 0
    %v1952 = vsel %vm1513, %v1862, 0
    %v1955 = vsel %vm1513, %v1863, 0
    %v1958 = vsel %vm1513, %v1864, 0
    %v1961 = vsel %vm1513, %v1865, 0
    %vm1963 = vcmask 1043456
    %v1965 = vsel %vm1963, %v1866, 0
    %1967 = vmatprep.subr.mxu0 0.0
    %1968 = vmatpush1.msra.mxu0 %v1965
    %1969 = vmatprep.subr.mxu0 0.0
    %1970 = vmatpush1.msra.mxu0 0.0
    %1971 = vmatprep.subr.mxu0 0.0
    %1972 = vmatpush1.msra.mxu0 0.0
    %1973 = vmatprep.subr.mxu0 0.0
    %1974 = vmatpush1.msra.mxu0 0.0
    %1975 = vmatprep.subr.mxu0 0.0
    %1976 = vmatpush1.msra.mxu0 0.0
    %1977 = vmatprep.subr.mxu0 0.0
    %1978 = vmatpush1.msra.mxu0 0.0
    %1979 = vmatprep.subr.mxu0 0.0
    %1980 = vmatpush1.msra.mxu0 0.0
    %1981 = vmatprep.subr.mxu0 0.0
    %1982 = vmatpush1.msra.mxu0 0.0
    %1983 = vmatprep.subr.mxu0 0.0
    %1984 = vmatpush1.msra.mxu0 0.0
    %1985 = vmatprep.subr.mxu0 0.0
    %1986 = vmatpush1.msra.mxu0 0.0
    %1987 = vmatprep.subr.mxu0 0.0
    %1988 = vmatpush1.msra.mxu0 0.0
    %1989 = vmatprep.subr.mxu0 0.0
    %1990 = vmatpush1.msra.mxu0 0.0
    %1991 = vmatprep.subr.mxu0 0.0
    %1992 = vmatpush1.msra.mxu0 0.0
    %1993 = vmatprep.subr.mxu0 0.0
    %1994 = vmatpush1.msra.mxu0 0.0
    %1995 = vmatprep.subr.mxu0 0.0
    %1996 = vmatpush1.msra.mxu0 0.0
    %1997 = vmatprep.subr.mxu0 0.0
    %1998 = vmatpush1.msra.mxu0 0.0
    %1999 = vmatprep.subr.mxu0 0.0
    %2000 = vmatpush1.msra.mxu0 0.0
    %2001 = vmatprep.subr.mxu0 0.0
    %2002 = vmatpush1.msra.mxu0 0.0
    %2003 = vmatprep.subr.mxu0 0.0
    %2004 = vmatpush1.msra.mxu0 0.0
    %2005 = vmatprep.subr.mxu0 0.0
    %2006 = vmatpush1.msra.mxu0 0.0
    %2007 = vmatprep.subr.mxu0 0.0
    %2008 = vmatpush1.msra.mxu0 0.0
    %2009 = vmatprep.subr.mxu0 0.0
    %2010 = vmatpush1.msra.mxu0 0.0
    %2011 = vmatprep.subr.mxu0 0.0
    %2012 = vmatpush1.msra.mxu0 0.0
    %2013 = vmatprep.subr.mxu0 0.0
    %2014 = vmatpush1.msra.mxu0 0.0
    %2015 = vmatprep.subr.mxu0 0.0
    %2016 = vmatpush1.msra.mxu0 0.0
    %2017 = vmatprep.subr.mxu0 0.0
    %2018 = vmatpush1.msra.mxu0 0.0
    %2019 = vmatprep.subr.mxu0 0.0
    %2020 = vmatpush1.msra.mxu0 0.0
    %2021 = vmatprep.subr.mxu0 0.0
    %2022 = vmatpush1.msra.mxu0 0.0
    %2023 = vmatprep.subr.mxu0 0.0
    %2024 = vmatpush1.msra.mxu0 0.0
    %2025 = vmatprep.subr.mxu0 0.0
    %2026 = vmatpush1.msra.mxu0 0.0
    %2027 = vmatprep.subr.mxu0 0.0
    %2028 = vmatpush1.msra.mxu0 0.0
    %2029 = vmatprep.subr.mxu0 0.0
    %2030 = vmatpush1.msra.mxu0 0.0
    %2031 = vmatprep.mubr.f32.mxu0 0.0
    %2032 = vmatmul.mubr.f32.gmra.mrb[0].mxu0 %v1868
    %v2033 = vpop.f32.mrb[0].mxu0
    %v2034 = vadd.f32 0.0, %v2033
    %v2035 = vpop.f32.mrb[0].mxu0
    %2036 = vmatprep.mubr.f32.mxu0 0.0
    %2037 = vmatmul.mubr.f32.gmra.mrb[0].mxu0 %v1871
    %v2038 = vpop.f32.mrb[0].mxu0
    %v2039 = vadd.f32 0.0, %v2038
    %v2040 = vpop.f32.mrb[0].mxu0
    %2041 = vmatprep.mubr.f32.mxu0 0.0
    %2042 = vmatmul.mubr.f32.gmra.mrb[0].mxu0 %v1874
    %v2043 = vpop.f32.mrb[0].mxu0
    %v2044 = vadd.f32 0.0, %v2043
    %v2045 = vpop.f32.mrb[0].mxu0
    %2046 = vmatprep.mubr.f32.mxu0 0.0
    %2047 = vmatmul.mubr.f32.gmra.mrb[0].mxu0 %v1877
    %v2048 = vpop.f32.mrb[0].mxu0
    %v2049 = vadd.f32 0.0, %v2048
    %v2050 = vpop.f32.mrb[0].mxu0
    %2051 = vmatprep.mubr.f32.mxu0 0.0
    %2052 = vmatmul.mubr.f32.gmra.mrb[0].mxu0 %v1880
    %v2053 = vpop.f32.mrb[0].mxu0
    %v2054 = vadd.f32 0.0, %v2053
    %v2055 = vpop.f32.mrb[0].mxu0
    %2056 = vmatprep.mubr.f32.mxu0 0.0
    %2057 = vmatmul.mubr.f32.gmra.mrb[0].mxu0 %v1883
    %v2058 = vpop.f32.mrb[0].mxu0
    %v2059 = vadd.f32 0.0, %v2058
    %v2060 = vpop.f32.mrb[0].mxu0
    %2061 = vmatprep.mubr.f32.mxu0 0.0
    %2062 = vmatmul.mubr.f32.gmra.mrb[0].mxu0 %v1886
    %v2063 = vpop.f32.mrb[0].mxu0
    %v2064 = vadd.f32 0.0, %v2063
    %v2065 = vpop.f32.mrb[0].mxu0
    %2066 = vmatprep.mubr.f32.mxu0 0.0
    %2067 = vmatmul.mubr.f32.gmra.mrb[0].mxu0 %v1889
    %v2068 = vpop.f32.mrb[0].mxu0
    %v2069 = vadd.f32 0.0, %v2068
    %v2070 = vpop.f32.mrb[0].mxu0
    %2071 = vmatprep.mubr.f32.mxu0 0.0
    %2072 = vmatmul.mubr.f32.gmra.mrb[0].mxu0 %v1892
    %v2073 = vpop.f32.mrb[0].mxu0
    %v2074 = vadd.f32 0.0, %v2073
    %v2075 = vpop.f32.mrb[0].mxu0
    %2076 = vmatprep.mubr.f32.mxu0 0.0
    %2077 = vmatmul.mubr.f32.gmra.mrb[0].mxu0 %v1895
    %v2078 = vpop.f32.mrb[0].mxu0
    %v2079 = vadd.f32 0.0, %v2078
    %v2080 = vpop.f32.mrb[0].mxu0
    %2081 = vmatprep.mubr.f32.mxu0 0.0
    %2082 = vmatmul.mubr.f32.gmra.mrb[0].mxu0 %v1898
    %v2083 = vpop.f32.mrb[0].mxu0
    %v2084 = vadd.f32 0.0, %v2083
    %v2085 = vpop.f32.mrb[0].mxu0
    %2086 = vmatprep.mubr.f32.mxu0 0.0
    %2087 = vmatmul.mubr.f32.gmra.mrb[0].mxu0 %v1901
    %v2088 = vpop.f32.mrb[0].mxu0
    %v2089 = vadd.f32 0.0, %v2088
    %v2090 = vpop.f32.mrb[0].mxu0
    %2091 = vmatprep.mubr.f32.mxu0 0.0
    %2092 = vmatmul.mubr.f32.gmra.mrb[0].mxu0 %v1904
    %v2093 = vpop.f32.mrb[0].mxu0
    %v2094 = vadd.f32 0.0, %v2093
    %v2095 = vpop.f32.mrb[0].mxu0
    %2096 = vmatprep.mubr.f32.mxu0 0.0
    %2097 = vmatmul.mubr.f32.gmra.mrb[0].mxu0 %v1907
    %v2098 = vpop.f32.mrb[0].mxu0
    %v2099 = vadd.f32 0.0, %v2098
    %v2100 = vpop.f32.mrb[0].mxu0
    %2101 = vmatprep.mubr.f32.mxu0 0.0
    %2102 = vmatmul.mubr.f32.gmra.mrb[0].mxu0 %v1910
    %v2103 = vpop.f32.mrb[0].mxu0
    %v2104 = vadd.f32 0.0, %v2103
    %v2105 = vpop.f32.mrb[0].mxu0
    %2106 = vmatprep.mubr.f32.mxu0 0.0
    %2107 = vmatmul.mubr.f32.gmra.mrb[0].mxu0 %v1913
    %v2108 = vpop.f32.mrb[0].mxu0
    %v2109 = vadd.f32 0.0, %v2108
    %v2110 = vpop.f32.mrb[0].mxu0
    %2111 = vmatprep.mubr.f32.mxu0 0.0
    %2112 = vmatmul.mubr.f32.gmra.mrb[0].mxu0 %v1916
    %v2113 = vpop.f32.mrb[0].mxu0
    %v2114 = vadd.f32 0.0, %v2113
    %v2115 = vpop.f32.mrb[0].mxu0
    %2116 = vmatprep.mubr.f32.mxu0 0.0
    %2117 = vmatmul.mubr.f32.gmra.mrb[0].mxu0 %v1919
    %v2118 = vpop.f32.mrb[0].mxu0
    %v2119 = vadd.f32 0.0, %v2118
    %v2120 = vpop.f32.mrb[0].mxu0
    %2121 = vmatprep.mubr.f32.mxu0 0.0
    %2122 = vmatmul.mubr.f32.gmra.mrb[0].mxu0 %v1922
    %v2123 = vpop.f32.mrb[0].mxu0
    %v2124 = vadd.f32 0.0, %v2123
    %v2125 = vpop.f32.mrb[0].mxu0
    %2126 = vmatprep.mubr.f32.mxu0 0.0
    %2127 = vmatmul.mubr.f32.gmra.mrb[0].mxu0 %v1925
    %v2128 = vpop.f32.mrb[0].mxu0
    %v2129 = vadd.f32 0.0, %v2128
    %v2130 = vpop.f32.mrb[0].mxu0
    %2131 = vmatprep.mubr.f32.mxu0 0.0
    %2132 = vmatmul.mubr.f32.gmra.mrb[0].mxu0 %v1928
    %v2133 = vpop.f32.mrb[0].mxu0
    %v2134 = vadd.f32 0.0, %v2133
    %v2135 = vpop.f32.mrb[0].mxu0
    %2136 = vmatprep.mubr.f32.mxu0 0.0
    %2137 = vmatmul.mubr.f32.gmra.mrb[0].mxu0 %v1931
    %v2138 = vpop.f32.mrb[0].mxu0
    %v2139 = vadd.f32 0.0, %v2138
    %v2140 = vpop.f32.mrb[0].mxu0
    %2141 = vmatprep.mubr.f32.mxu0 0.0
    %2142 = vmatmul.mubr.f32.gmra.mrb[0].mxu0 %v1934
    %v2143 = vpop.f32.mrb[0].mxu0
    %v2144 = vadd.f32 0.0, %v2143
    %v2145 = vpop.f32.mrb[0].mxu0
    %2146 = vmatprep.mubr.f32.mxu0 0.0
    %2147 = vmatmul.mubr.f32.gmra.mrb[0].mxu0 %v1937
    %v2148 = vpop.f32.mrb[0].mxu0
    %v2149 = vadd.f32 0.0, %v2148
    %v2150 = vpop.f32.mrb[0].mxu0
    %2151 = vmatprep.mubr.f32.mxu0 0.0
    %2152 = vmatmul.mubr.f32.gmra.mrb[0].mxu0 %v1940
    %v2153 = vpop.f32.mrb[0].mxu0
    %v2154 = vadd.f32 0.0, %v2153
    %v2155 = vpop.f32.mrb[0].mxu0
    %2156 = vmatprep.mubr.f32.mxu0 0.0
    %2157 = vmatmul.mubr.f32.gmra.mrb[0].mxu0 %v1943
    %v2158 = vpop.f32.mrb[0].mxu0
    %v2159 = vadd.f32 0.0, %v2158
    %v2160 = vpop.f32.mrb[0].mxu0
    %2161 = vmatprep.mubr.f32.mxu0 0.0
    %2162 = vmatmul.mubr.f32.gmra.mrb[0].mxu0 %v1946
    %v2163 = vpop.f32.mrb[0].mxu0
    %v2164 = vadd.f32 0.0, %v2163
    %v2165 = vpop.f32.mrb[0].mxu0
    %2166 = vmatprep.mubr.f32.mxu0 0.0
    %2167 = vmatmul.mubr.f32.gmra.mrb[0].mxu0 %v1949
    %v2168 = vpop.f32.mrb[0].mxu0
    %v2169 = vadd.f32 0.0, %v2168
    %v2170 = vpop.f32.mrb[0].mxu0
    %2171 = vmatprep.mubr.f32.mxu0 0.0
    %2172 = vmatmul.mubr.f32.gmra.mrb[0].mxu0 %v1952
    %v2173 = vpop.f32.mrb[0].mxu0
    %v2174 = vadd.f32 0.0, %v2173
    %v2175 = vpop.f32.mrb[0].mxu0
    %2176 = vmatprep.mubr.f32.mxu0 0.0
    %2177 = vmatmul.mubr.f32.gmra.mrb[0].mxu0 %v1955
    %v2178 = vpop.f32.mrb[0].mxu0
    %v2179 = vadd.f32 0.0, %v2178
    %v2180 = vpop.f32.mrb[0].mxu0
    %2181 = vmatprep.mubr.f32.mxu0 0.0
    %2182 = vmatmul.mubr.f32.gmra.mrb[0].mxu0 %v1958
    %v2183 = vpop.f32.mrb[0].mxu0
    %v2184 = vadd.f32 0.0, %v2183
    %v2185 = vpop.f32.mrb[0].mxu0
    %2186 = vmatprep.mubr.f32.mxu0 0.0
    %2187 = vmatmul.mubr.f32.gmra.mrb[0].mxu0 %v1961
    %v2188 = vpop.f32.mrb[0].mxu0
    %v2189 = vadd.f32 0.0, %v2188
    %v2190 = vpop.f32.mrb[0].mxu0
    %2191 = vdwg.mxu0
    %2224 = vrot.lane.b32.xlu0 %v2034, 64
    %v2225 = vpop.permute.xlu0 %2224
    %2226 = vrot.lane.b32.xlu0 %v2039, 64
    %v2227 = vpop.permute.xlu0 %2226
    %2228 = vrot.lane.b32.xlu0 %v2044, 64
    %v2229 = vpop.permute.xlu0 %2228
    %2230 = vrot.lane.b32.xlu0 %v2049, 64
    %v2231 = vpop.permute.xlu0 %2230
    %2232 = vrot.lane.b32.xlu0 %v2054, 64
    %v2233 = vpop.permute.xlu0 %2232
    %2234 = vrot.lane.b32.xlu0 %v2059, 64
    %v2235 = vpop.permute.xlu0 %2234
    %2236 = vrot.lane.b32.xlu0 %v2064, 64
    %v2237 = vpop.permute.xlu0 %2236
    %2238 = vrot.lane.b32.xlu0 %v2069, 64
    %v2239 = vpop.permute.xlu0 %2238
    %2240 = vrot.lane.b32.xlu0 %v2074, 64
    %v2241 = vpop.permute.xlu0 %2240
    %2242 = vrot.lane.b32.xlu0 %v2079, 64
    %v2243 = vpop.permute.xlu0 %2242
    %2244 = vrot.lane.b32.xlu0 %v2084, 64
    %v2245 = vpop.permute.xlu0 %2244
    %2246 = vrot.lane.b32.xlu0 %v2089, 64
    %v2247 = vpop.permute.xlu0 %2246
    %2248 = vrot.lane.b32.xlu0 %v2094, 64
    %v2249 = vpop.permute.xlu0 %2248
    %2250 = vrot.lane.b32.xlu0 %v2099, 64
    %v2251 = vpop.permute.xlu0 %2250
    %2252 = vrot.lane.b32.xlu0 %v2104, 64
    %v2253 = vpop.permute.xlu0 %2252
    %2254 = vrot.lane.b32.xlu0 %v2109, 64
    %v2255 = vpop.permute.xlu0 %2254
    %2256 = vrot.lane.b32.xlu0 %v2114, 64
    %v2257 = vpop.permute.xlu0 %2256
    %2258 = vrot.lane.b32.xlu0 %v2119, 64
    %v2259 = vpop.permute.xlu0 %2258
    %2260 = vrot.lane.b32.xlu0 %v2124, 64
    %v2261 = vpop.permute.xlu0 %2260
    %2262 = vrot.lane.b32.xlu0 %v2129, 64
    %v2263 = vpop.permute.xlu0 %2262
    %2264 = vrot.lane.b32.xlu0 %v2134, 64
    %v2265 = vpop.permute.xlu0 %2264
    %2266 = vrot.lane.b32.xlu0 %v2139, 64
    %v2267 = vpop.permute.xlu0 %2266
    %2268 = vrot.lane.b32.xlu0 %v2144, 64
    %v2269 = vpop.permute.xlu0 %2268
    %2270 = vrot.lane.b32.xlu0 %v2149, 64
    %v2271 = vpop.permute.xlu0 %2270
    %2272 = vrot.lane.b32.xlu0 %v2154, 64
    %v2273 = vpop.permute.xlu0 %2272
    %2274 = vrot.lane.b32.xlu0 %v2159, 64
    %v2275 = vpop.permute.xlu0 %2274
    %2276 = vrot.lane.b32.xlu0 %v2164, 64
    %v2277 = vpop.permute.xlu0 %2276
    %2278 = vrot.lane.b32.xlu0 %v2169, 64
    %v2279 = vpop.permute.xlu0 %2278
    %2280 = vrot.lane.b32.xlu0 %v2174, 64
    %v2281 = vpop.permute.xlu0 %2280
    %2282 = vrot.lane.b32.xlu0 %v2179, 64
    %v2283 = vpop.permute.xlu0 %2282
    %2284 = vrot.lane.b32.xlu0 %v2184, 64
    %v2285 = vpop.permute.xlu0 %2284
    %2286 = vrot.lane.b32.xlu0 %v2189, 64
    %v2287 = vpop.permute.xlu0 %2286
    %v2320 = vmul.f32 %v870, %v2225
    %v2321 = vmul.f32 %v875, %v2227
    %v2322 = vmul.f32 %v880, %v2229
    %v2323 = vmul.f32 %v885, %v2231
    %v2324 = vmul.f32 %v890, %v2233
    %v2325 = vmul.f32 %v895, %v2235
    %v2326 = vmul.f32 %v900, %v2237
    %v2327 = vmul.f32 %v905, %v2239
    %v2328 = vmul.f32 %v910, %v2241
    %v2329 = vmul.f32 %v915, %v2243
    %v2330 = vmul.f32 %v920, %v2245
    %v2331 = vmul.f32 %v925, %v2247
    %v2332 = vmul.f32 %v930, %v2249
    %v2333 = vmul.f32 %v935, %v2251
    %v2334 = vmul.f32 %v940, %v2253
    %v2335 = vmul.f32 %v945, %v2255
    %v2336 = vmul.f32 %v950, %v2257
    %v2337 = vmul.f32 %v955, %v2259
    %v2338 = vmul.f32 %v960, %v2261
    %v2339 = vmul.f32 %v965, %v2263
    %v2340 = vmul.f32 %v970, %v2265
    %v2341 = vmul.f32 %v975, %v2267
    %v2342 = vmul.f32 %v980, %v2269
    %v2343 = vmul.f32 %v985, %v2271
    %v2344 = vmul.f32 %v990, %v2273
    %v2345 = vmul.f32 %v995, %v2275
    %v2346 = vmul.f32 %v1000, %v2277
    %v2347 = vmul.f32 %v1005, %v2279
    %v2348 = vmul.f32 %v1010, %v2281
    %v2349 = vmul.f32 %v1015, %v2283
    %v2350 = vmul.f32 %v1020, %v2285
    %v2351 = vmul.f32 %v1025, %v2287
    %v2352 = vld [vmem:[%s7] sm:$0xff]
    %v2353 = vld [vmem:[%s7 + $0x8] sm:$0xff]
    %v2354 = vld [vmem:[%s7 + $0x10] sm:$0xff]
    %v2355 = vld [vmem:[%s7 + $0x18] sm:$0xff]
    %v2356 = vld [vmem:[%s8] sm:$0x1]
    %v2358 = vlaneseq
    %v2359 = vshrl.u32 %v2358, 7
    %v2360 = vsub.s32 0, %v2359
    %v2361 = vrot.slane %v2356, %v2360
    %2395 = vrot.lane.b32.xlu0 %v2320, 64
    %v2396 = vpop.permute.xlu0 %2395
    %2397 = vrot.lane.b32.xlu0 %v2321, 64
    %v2398 = vpop.permute.xlu0 %2397
    %2399 = vrot.lane.b32.xlu0 %v2322, 64
    %v2400 = vpop.permute.xlu0 %2399
    %2401 = vrot.lane.b32.xlu0 %v2323, 64
    %v2402 = vpop.permute.xlu0 %2401
    %2403 = vrot.lane.b32.xlu0 %v2324, 64
    %v2404 = vpop.permute.xlu0 %2403
    %2405 = vrot.lane.b32.xlu0 %v2325, 64
    %v2406 = vpop.permute.xlu0 %2405
    %2407 = vrot.lane.b32.xlu0 %v2326, 64
    %v2408 = vpop.permute.xlu0 %2407
    %2409 = vrot.lane.b32.xlu0 %v2327, 64
    %v2410 = vpop.permute.xlu0 %2409
    %2411 = vrot.lane.b32.xlu0 %v2328, 64
    %v2412 = vpop.permute.xlu0 %2411
    %2413 = vrot.lane.b32.xlu0 %v2329, 64
    %v2414 = vpop.permute.xlu0 %2413
    %2415 = vrot.lane.b32.xlu0 %v2330, 64
    %v2416 = vpop.permute.xlu0 %2415
    %2417 = vrot.lane.b32.xlu0 %v2331, 64
    %v2418 = vpop.permute.xlu0 %2417
    %2419 = vrot.lane.b32.xlu0 %v2332, 64
    %v2420 = vpop.permute.xlu0 %2419
    %2421 = vrot.lane.b32.xlu0 %v2333, 64
    %v2422 = vpop.permute.xlu0 %2421
    %2423 = vrot.lane.b32.xlu0 %v2334, 64
    %v2424 = vpop.permute.xlu0 %2423
    %2425 = vrot.lane.b32.xlu0 %v2335, 64
    %v2426 = vpop.permute.xlu0 %2425
    %2427 = vrot.lane.b32.xlu0 %v2336, 64
    %v2428 = vpop.permute.xlu0 %2427
    %2429 = vrot.lane.b32.xlu0 %v2337, 64
    %v2430 = vpop.permute.xlu0 %2429
    %2431 = vrot.lane.b32.xlu0 %v2338, 64
    %v2432 = vpop.permute.xlu0 %2431
    %2433 = vrot.lane.b32.xlu0 %v2339, 64
    %v2434 = vpop.permute.xlu0 %2433
    %2435 = vrot.lane.b32.xlu0 %v2340, 64
    %v2436 = vpop.permute.xlu0 %2435
    %2437 = vrot.lane.b32.xlu0 %v2341, 64
    %v2438 = vpop.permute.xlu0 %2437
    %2439 = vrot.lane.b32.xlu0 %v2342, 64
    %v2440 = vpop.permute.xlu0 %2439
    %2441 = vrot.lane.b32.xlu0 %v2343, 64
    %v2442 = vpop.permute.xlu0 %2441
    %2443 = vrot.lane.b32.xlu0 %v2344, 64
    %v2444 = vpop.permute.xlu0 %2443
    %2445 = vrot.lane.b32.xlu0 %v2345, 64
    %v2446 = vpop.permute.xlu0 %2445
    %2447 = vrot.lane.b32.xlu0 %v2346, 64
    %v2448 = vpop.permute.xlu0 %2447
    %2449 = vrot.lane.b32.xlu0 %v2347, 64
    %v2450 = vpop.permute.xlu0 %2449
    %2451 = vrot.lane.b32.xlu0 %v2348, 64
    %v2452 = vpop.permute.xlu0 %2451
    %2453 = vrot.lane.b32.xlu0 %v2349, 64
    %v2454 = vpop.permute.xlu0 %2453
    %2455 = vrot.lane.b32.xlu0 %v2350, 64
    %v2456 = vpop.permute.xlu0 %2455
    %2457 = vrot.lane.b32.xlu0 %v2351, 64
    %v2458 = vpop.permute.xlu0 %2457
    %v2459 = vsel %vm297, %v2396, 0
    %v2461 = vsel %vm297, %v2398, 0
    %v2463 = vsel %vm297, %v2400, 0
    %v2465 = vsel %vm297, %v2402, 0
    %v2467 = vsel %vm297, %v2404, 0
    %v2469 = vsel %vm297, %v2406, 0
    %v2471 = vsel %vm297, %v2408, 0
    %v2473 = vsel %vm297, %v2410, 0
    %v2475 = vsel %vm297, %v2412, 0
    %v2477 = vsel %vm297, %v2414, 0
    %v2479 = vsel %vm297, %v2416, 0
    %v2481 = vsel %vm297, %v2418, 0
    %v2483 = vsel %vm297, %v2420, 0
    %v2485 = vsel %vm297, %v2422, 0
    %v2487 = vsel %vm297, %v2424, 0
    %v2489 = vsel %vm297, %v2426, 0
    %v2491 = vsel %vm297, %v2428, 0
    %v2493 = vsel %vm297, %v2430, 0
    %v2495 = vsel %vm297, %v2432, 0
    %v2497 = vsel %vm297, %v2434, 0
    %v2499 = vsel %vm297, %v2436, 0
    %v2501 = vsel %vm297, %v2438, 0
    %v2503 = vsel %vm297, %v2440, 0
    %v2505 = vsel %vm297, %v2442, 0
    %v2507 = vsel %vm297, %v2444, 0
    %v2509 = vsel %vm297, %v2446, 0
    %v2511 = vsel %vm297, %v2448, 0
    %v2513 = vsel %vm297, %v2450, 0
    %v2515 = vsel %vm297, %v2452, 0
    %v2517 = vsel %vm297, %v2454, 0
    %v2519 = vsel %vm297, %v2456, 0
    %v2521 = vsel %vm297, %v2458, 0
    %2523 = vmatprep.subr.mxu0 0.0
    %2524 = vmatpush1.msra.mxu0 %v2352
    %2525 = vmatprep.subr.mxu0 0.0
    %2526 = vmatpush1.msra.mxu0 %v2353
    %2527 = vmatprep.subr.mxu0 0.0
    %2528 = vmatpush1.msra.mxu0 %v2354
    %2529 = vmatprep.subr.mxu0 0.0
    %2530 = vmatpush1.msra.mxu0 %v2355
    %2531 = vmatprep.subr.mxu0 0.0
    %2532 = vmatpush1.msra.mxu0 0.0
    %2533 = vmatprep.subr.mxu0 0.0
    %2534 = vmatpush1.msra.mxu0 0.0
    %2535 = vmatprep.subr.mxu0 0.0
    %2536 = vmatpush1.msra.mxu0 0.0
    %2537 = vmatprep.subr.mxu0 0.0
    %2538 = vmatpush1.msra.mxu0 0.0
    %2539 = vmatprep.subr.mxu0 0.0
    %2540 = vmatpush1.msra.mxu0 0.0
    %2541 = vmatprep.subr.mxu0 0.0
    %2542 = vmatpush1.msra.mxu0 0.0
    %2543 = vmatprep.subr.mxu0 0.0
    %2544 = vmatpush1.msra.mxu0 0.0
    %2545 = vmatprep.subr.mxu0 0.0
    %2546 = vmatpush1.msra.mxu0 0.0
    %2547 = vmatprep.subr.mxu0 0.0
    %2548 = vmatpush1.msra.mxu0 0.0
    %2549 = vmatprep.subr.mxu0 0.0
    %2550 = vmatpush1.msra.mxu0 0.0
    %2551 = vmatprep.subr.mxu0 0.0
    %2552 = vmatpush1.msra.mxu0 0.0
    %2553 = vmatprep.subr.mxu0 0.0
    %2554 = vmatpush1.msra.mxu0 0.0
    %2555 = vmatprep.subr.mxu0 0.0
    %2556 = vmatpush1.msra.mxu0 0.0
    %2557 = vmatprep.subr.mxu0 0.0
    %2558 = vmatpush1.msra.mxu0 0.0
    %2559 = vmatprep.subr.mxu0 0.0
    %2560 = vmatpush1.msra.mxu0 0.0
    %2561 = vmatprep.subr.mxu0 0.0
    %2562 = vmatpush1.msra.mxu0 0.0
    %2563 = vmatprep.subr.mxu0 0.0
    %2564 = vmatpush1.msra.mxu0 0.0
    %2565 = vmatprep.subr.mxu0 0.0
    %2566 = vmatpush1.msra.mxu0 0.0
    %2567 = vmatprep.subr.mxu0 0.0
    %2568 = vmatpush1.msra.mxu0 0.0
    %2569 = vmatprep.subr.mxu0 0.0
    %2570 = vmatpush1.msra.mxu0 0.0
    %2571 = vmatprep.subr.mxu0 0.0
    %2572 = vmatpush1.msra.mxu0 0.0
    %2573 = vmatprep.subr.mxu0 0.0
    %2574 = vmatpush1.msra.mxu0 0.0
    %2575 = vmatprep.subr.mxu0 0.0
    %2576 = vmatpush1.msra.mxu0 0.0
    %2577 = vmatprep.subr.mxu0 0.0
    %2578 = vmatpush1.msra.mxu0 0.0
    %2579 = vmatprep.subr.mxu0 0.0
    %2580 = vmatpush1.msra.mxu0 0.0
    %2581 = vmatprep.subr.mxu0 0.0
    %2582 = vmatpush1.msra.mxu0 0.0
    %2583 = vmatprep.subr.mxu0 0.0
    %2584 = vmatpush1.msra.mxu0 0.0
    %2585 = vmatprep.subr.mxu0 0.0
    %2586 = vmatpush1.msra.mxu0 0.0
    %2587 = vmatprep.mubr.f32.mxu0 0.0
    %2588 = vmatmul.mubr.f32.gmra.mrb[0].mxu0 %v2459
    %v2589 = vpop.f32.mrb[0].mxu0
    %v2590 = vadd.f32 %v2361, %v2589
    %v2591 = vpop.f32.mrb[0].mxu0
    %2592 = vmatprep.mubr.f32.mxu0 0.0
    %2593 = vmatmul.mubr.f32.gmra.mrb[0].mxu0 %v2461
    %v2594 = vpop.f32.mrb[0].mxu0
    %v2595 = vadd.f32 %v2361, %v2594
    %v2596 = vpop.f32.mrb[0].mxu0
    %2597 = vmatprep.mubr.f32.mxu0 0.0
    %2598 = vmatmul.mubr.f32.gmra.mrb[0].mxu0 %v2463
    %v2599 = vpop.f32.mrb[0].mxu0
    %v2600 = vadd.f32 %v2361, %v2599
    %v2601 = vpop.f32.mrb[0].mxu0
    %2602 = vmatprep.mubr.f32.mxu0 0.0
    %2603 = vmatmul.mubr.f32.gmra.mrb[0].mxu0 %v2465
    %v2604 = vpop.f32.mrb[0].mxu0
    %v2605 = vadd.f32 %v2361, %v2604
    %v2606 = vpop.f32.mrb[0].mxu0
    %2607 = vmatprep.mubr.f32.mxu0 0.0
    %2608 = vmatmul.mubr.f32.gmra.mrb[0].mxu0 %v2467
    %v2609 = vpop.f32.mrb[0].mxu0
    %v2610 = vadd.f32 %v2361, %v2609
    %v2611 = vpop.f32.mrb[0].mxu0
    %2612 = vmatprep.mubr.f32.mxu0 0.0
    %2613 = vmatmul.mubr.f32.gmra.mrb[0].mxu0 %v2469
    %v2614 = vpop.f32.mrb[0].mxu0
    %v2615 = vadd.f32 %v2361, %v2614
    %v2616 = vpop.f32.mrb[0].mxu0
    %2617 = vmatprep.mubr.f32.mxu0 0.0
    %2618 = vmatmul.mubr.f32.gmra.mrb[0].mxu0 %v2471
    %v2619 = vpop.f32.mrb[0].mxu0
    %v2620 = vadd.f32 %v2361, %v2619
    %v2621 = vpop.f32.mrb[0].mxu0
    %2622 = vmatprep.mubr.f32.mxu0 0.0
    %2623 = vmatmul.mubr.f32.gmra.mrb[0].mxu0 %v2473
    %v2624 = vpop.f32.mrb[0].mxu0
    %v2625 = vadd.f32 %v2361, %v2624
    %v2626 = vpop.f32.mrb[0].mxu0
    %2627 = vmatprep.mubr.f32.mxu0 0.0
    %2628 = vmatmul.mubr.f32.gmra.mrb[0].mxu0 %v2475
    %v2629 = vpop.f32.mrb[0].mxu0
    %v2630 = vadd.f32 %v2361, %v2629
    %v2631 = vpop.f32.mrb[0].mxu0
    %2632 = vmatprep.mubr.f32.mxu0 0.0
    %2633 = vmatmul.mubr.f32.gmra.mrb[0].mxu0 %v2477
    %v2634 = vpop.f32.mrb[0].mxu0
    %v2635 = vadd.f32 %v2361, %v2634
    %v2636 = vpop.f32.mrb[0].mxu0
    %2637 = vmatprep.mubr.f32.mxu0 0.0
    %2638 = vmatmul.mubr.f32.gmra.mrb[0].mxu0 %v2479
    %v2639 = vpop.f32.mrb[0].mxu0
    %v2640 = vadd.f32 %v2361, %v2639
    %v2641 = vpop.f32.mrb[0].mxu0
    %2642 = vmatprep.mubr.f32.mxu0 0.0
    %2643 = vmatmul.mubr.f32.gmra.mrb[0].mxu0 %v2481
    %v2644 = vpop.f32.mrb[0].mxu0
    %v2645 = vadd.f32 %v2361, %v2644
    %v2646 = vpop.f32.mrb[0].mxu0
    %2647 = vmatprep.mubr.f32.mxu0 0.0
    %2648 = vmatmul.mubr.f32.gmra.mrb[0].mxu0 %v2483
    %v2649 = vpop.f32.mrb[0].mxu0
    %v2650 = vadd.f32 %v2361, %v2649
    %v2651 = vpop.f32.mrb[0].mxu0
    %2652 = vmatprep.mubr.f32.mxu0 0.0
    %2653 = vmatmul.mubr.f32.gmra.mrb[0].mxu0 %v2485
    %v2654 = vpop.f32.mrb[0].mxu0
    %v2655 = vadd.f32 %v2361, %v2654
    %v2656 = vpop.f32.mrb[0].mxu0
    %2657 = vmatprep.mubr.f32.mxu0 0.0
    %2658 = vmatmul.mubr.f32.gmra.mrb[0].mxu0 %v2487
    %v2659 = vpop.f32.mrb[0].mxu0
    %v2660 = vadd.f32 %v2361, %v2659
    %v2661 = vpop.f32.mrb[0].mxu0
    %2662 = vmatprep.mubr.f32.mxu0 0.0
    %2663 = vmatmul.mubr.f32.gmra.mrb[0].mxu0 %v2489
    %v2664 = vpop.f32.mrb[0].mxu0
    %v2665 = vadd.f32 %v2361, %v2664
    %v2666 = vpop.f32.mrb[0].mxu0
    %2667 = vmatprep.mubr.f32.mxu0 0.0
    %2668 = vmatmul.mubr.f32.gmra.mrb[0].mxu0 %v2491
    %v2669 = vpop.f32.mrb[0].mxu0
    %v2670 = vadd.f32 %v2361, %v2669
    %v2671 = vpop.f32.mrb[0].mxu0
    %2672 = vmatprep.mubr.f32.mxu0 0.0
    %2673 = vmatmul.mubr.f32.gmra.mrb[0].mxu0 %v2493
    %v2674 = vpop.f32.mrb[0].mxu0
    %v2675 = vadd.f32 %v2361, %v2674
    %v2676 = vpop.f32.mrb[0].mxu0
    %2677 = vmatprep.mubr.f32.mxu0 0.0
    %2678 = vmatmul.mubr.f32.gmra.mrb[0].mxu0 %v2495
    %v2679 = vpop.f32.mrb[0].mxu0
    %v2680 = vadd.f32 %v2361, %v2679
    %v2681 = vpop.f32.mrb[0].mxu0
    %2682 = vmatprep.mubr.f32.mxu0 0.0
    %2683 = vmatmul.mubr.f32.gmra.mrb[0].mxu0 %v2497
    %v2684 = vpop.f32.mrb[0].mxu0
    %v2685 = vadd.f32 %v2361, %v2684
    %v2686 = vpop.f32.mrb[0].mxu0
    %2687 = vmatprep.mubr.f32.mxu0 0.0
    %2688 = vmatmul.mubr.f32.gmra.mrb[0].mxu0 %v2499
    %v2689 = vpop.f32.mrb[0].mxu0
    %v2690 = vadd.f32 %v2361, %v2689
    %v2691 = vpop.f32.mrb[0].mxu0
    %2692 = vmatprep.mubr.f32.mxu0 0.0
    %2693 = vmatmul.mubr.f32.gmra.mrb[0].mxu0 %v2501
    %v2694 = vpop.f32.mrb[0].mxu0
    %v2695 = vadd.f32 %v2361, %v2694
    %v2696 = vpop.f32.mrb[0].mxu0
    %2697 = vmatprep.mubr.f32.mxu0 0.0
    %2698 = vmatmul.mubr.f32.gmra.mrb[0].mxu0 %v2503
    %v2699 = vpop.f32.mrb[0].mxu0
    %v2700 = vadd.f32 %v2361, %v2699
    %v2701 = vpop.f32.mrb[0].mxu0
    %2702 = vmatprep.mubr.f32.mxu0 0.0
    %2703 = vmatmul.mubr.f32.gmra.mrb[0].mxu0 %v2505
    %v2704 = vpop.f32.mrb[0].mxu0
    %v2705 = vadd.f32 %v2361, %v2704
    %v2706 = vpop.f32.mrb[0].mxu0
    %2707 = vmatprep.mubr.f32.mxu0 0.0
    %2708 = vmatmul.mubr.f32.gmra.mrb[0].mxu0 %v2507
    %v2709 = vpop.f32.mrb[0].mxu0
    %v2710 = vadd.f32 %v2361, %v2709
    %v2711 = vpop.f32.mrb[0].mxu0
    %2712 = vmatprep.mubr.f32.mxu0 0.0
    %2713 = vmatmul.mubr.f32.gmra.mrb[0].mxu0 %v2509
    %v2714 = vpop.f32.mrb[0].mxu0
    %v2715 = vadd.f32 %v2361, %v2714
    %v2716 = vpop.f32.mrb[0].mxu0
    %2717 = vmatprep.mubr.f32.mxu0 0.0
    %2718 = vmatmul.mubr.f32.gmra.mrb[0].mxu0 %v2511
    %v2719 = vpop.f32.mrb[0].mxu0
    %v2720 = vadd.f32 %v2361, %v2719
    %v2721 = vpop.f32.mrb[0].mxu0
    %2722 = vmatprep.mubr.f32.mxu0 0.0
    %2723 = vmatmul.mubr.f32.gmra.mrb[0].mxu0 %v2513
    %v2724 = vpop.f32.mrb[0].mxu0
    %v2725 = vadd.f32 %v2361, %v2724
    %v2726 = vpop.f32.mrb[0].mxu0
    %2727 = vmatprep.mubr.f32.mxu0 0.0
    %2728 = vmatmul.mubr.f32.gmra.mrb[0].mxu0 %v2515
    %v2729 = vpop.f32.mrb[0].mxu0
    %v2730 = vadd.f32 %v2361, %v2729
    %v2731 = vpop.f32.mrb[0].mxu0
    %2732 = vmatprep.mubr.f32.mxu0 0.0
    %2733 = vmatmul.mubr.f32.gmra.mrb[0].mxu0 %v2517
    %v2734 = vpop.f32.mrb[0].mxu0
    %v2735 = vadd.f32 %v2361, %v2734
    %v2736 = vpop.f32.mrb[0].mxu0
    %2737 = vmatprep.mubr.f32.mxu0 0.0
    %2738 = vmatmul.mubr.f32.gmra.mrb[0].mxu0 %v2519
    %v2739 = vpop.f32.mrb[0].mxu0
    %v2740 = vadd.f32 %v2361, %v2739
    %v2741 = vpop.f32.mrb[0].mxu0
    %2742 = vmatprep.mubr.f32.mxu0 0.0
    %2743 = vmatmul.mubr.f32.gmra.mrb[0].mxu0 %v2521
    %v2744 = vpop.f32.mrb[0].mxu0
    %v2745 = vadd.f32 %v2361, %v2744
    %v2746 = vpop.f32.mrb[0].mxu0
    %2747 = vdwg.mxu0
    %v2748 = vmax.f32 %v2590, 0.0
    %v2749 = vmax.f32 %v2595, 0.0
    %v2750 = vmax.f32 %v2600, 0.0
    %v2751 = vmax.f32 %v2605, 0.0
    %v2752 = vmax.f32 %v2610, 0.0
    %v2753 = vmax.f32 %v2615, 0.0
    %v2754 = vmax.f32 %v2620, 0.0
    %v2755 = vmax.f32 %v2625, 0.0
    %v2756 = vmax.f32 %v2630, 0.0
    %v2757 = vmax.f32 %v2635, 0.0
    %v2758 = vmax.f32 %v2640, 0.0
    %v2759 = vmax.f32 %v2645, 0.0
    %v2760 = vmax.f32 %v2650, 0.0
    %v2761 = vmax.f32 %v2655, 0.0
    %v2762 = vmax.f32 %v2660, 0.0
    %v2763 = vmax.f32 %v2665, 0.0
    %v2764 = vmax.f32 %v2670, 0.0
    %v2765 = vmax.f32 %v2675, 0.0
    %v2766 = vmax.f32 %v2680, 0.0
    %v2767 = vmax.f32 %v2685, 0.0
    %v2768 = vmax.f32 %v2690, 0.0
    %v2769 = vmax.f32 %v2695, 0.0
    %v2770 = vmax.f32 %v2700, 0.0
    %v2771 = vmax.f32 %v2705, 0.0
    %v2772 = vmax.f32 %v2710, 0.0
    %v2773 = vmax.f32 %v2715, 0.0
    %v2774 = vmax.f32 %v2720, 0.0
    %v2775 = vmax.f32 %v2725, 0.0
    %v2776 = vmax.f32 %v2730, 0.0
    %v2777 = vmax.f32 %v2735, 0.0
    %v2778 = vmax.f32 %v2740, 0.0
    %v2779 = vmax.f32 %v2745, 0.0
    %v2780 = vld [vmem:[%s9] sm:$0xff]
    %v2782 = vsel %vm297, %v2780, 0
    %v2785 = vsel %vm297, %v2748, 0
    %v2788 = vsel %vm297, %v2749, 0
    %v2791 = vsel %vm297, %v2750, 0
    %v2794 = vsel %vm297, %v2751, 0
    %v2797 = vsel %vm297, %v2752, 0
    %v2800 = vsel %vm297, %v2753, 0
    %v2803 = vsel %vm297, %v2754, 0
    %v2806 = vsel %vm297, %v2755, 0
    %v2809 = vsel %vm297, %v2756, 0
    %v2812 = vsel %vm297, %v2757, 0
    %v2815 = vsel %vm297, %v2758, 0
    %v2818 = vsel %vm297, %v2759, 0
    %v2821 = vsel %vm297, %v2760, 0
    %v2824 = vsel %vm297, %v2761, 0
    %v2827 = vsel %vm297, %v2762, 0
    %v2830 = vsel %vm297, %v2763, 0
    %v2833 = vsel %vm297, %v2764, 0
    %v2836 = vsel %vm297, %v2765, 0
    %v2839 = vsel %vm297, %v2766, 0
    %v2842 = vsel %vm297, %v2767, 0
    %v2845 = vsel %vm297, %v2768, 0
    %v2848 = vsel %vm297, %v2769, 0
    %v2851 = vsel %vm297, %v2770, 0
    %v2854 = vsel %vm297, %v2771, 0
    %v2857 = vsel %vm297, %v2772, 0
    %v2860 = vsel %vm297, %v2773, 0
    %v2863 = vsel %vm297, %v2774, 0
    %v2866 = vsel %vm297, %v2775, 0
    %v2869 = vsel %vm297, %v2776, 0
    %v2872 = vsel %vm297, %v2777, 0
    %v2875 = vsel %vm297, %v2778, 0
    %v2878 = vsel %vm297, %v2779, 0
    %2880 = vmatprep.subr.mxu0 0.0
    %2881 = vmatpush1.xpose.msra.mxu0 %v2785
    %2882 = vmatprep.subr.mxu0 0.0
    %2883 = vmatpush1.xpose.msra.mxu0 %v2788
    %2884 = vmatprep.subr.mxu0 0.0
    %2885 = vmatpush1.xpose.msra.mxu0 %v2791
    %2886 = vmatprep.subr.mxu0 0.0
    %2887 = vmatpush1.xpose.msra.mxu0 %v2794
    %2888 = vmatprep.subr.mxu0 0.0
    %2889 = vmatpush1.xpose.msra.mxu0 %v2797
    %2890 = vmatprep.subr.mxu0 0.0
    %2891 = vmatpush1.xpose.msra.mxu0 %v2800
    %2892 = vmatprep.subr.mxu0 0.0
    %2893 = vmatpush1.xpose.msra.mxu0 %v2803
    %2894 = vmatprep.subr.mxu0 0.0
    %2895 = vmatpush1.xpose.msra.mxu0 %v2806
    %2896 = vmatprep.subr.mxu0 0.0
    %2897 = vmatpush1.xpose.msra.mxu0 %v2809
    %2898 = vmatprep.subr.mxu0 0.0
    %2899 = vmatpush1.xpose.msra.mxu0 %v2812
    %2900 = vmatprep.subr.mxu0 0.0
    %2901 = vmatpush1.xpose.msra.mxu0 %v2815
    %2902 = vmatprep.subr.mxu0 0.0
    %2903 = vmatpush1.xpose.msra.mxu0 %v2818
    %2904 = vmatprep.subr.mxu0 0.0
    %2905 = vmatpush1.xpose.msra.mxu0 %v2821
    %2906 = vmatprep.subr.mxu0 0.0
    %2907 = vmatpush1.xpose.msra.mxu0 %v2824
    %2908 = vmatprep.subr.mxu0 0.0
    %2909 = vmatpush1.xpose.msra.mxu0 %v2827
    %2910 = vmatprep.subr.mxu0 0.0
    %2911 = vmatpush1.xpose.msra.mxu0 %v2830
    %2912 = vmatprep.subr.mxu0 0.0
    %2913 = vmatpush1.xpose.msra.mxu0 %v2833
    %2914 = vmatprep.subr.mxu0 0.0
    %2915 = vmatpush1.xpose.msra.mxu0 %v2836
    %2916 = vmatprep.subr.mxu0 0.0
    %2917 = vmatpush1.xpose.msra.mxu0 %v2839
    %2918 = vmatprep.subr.mxu0 0.0
    %2919 = vmatpush1.xpose.msra.mxu0 %v2842
    %2920 = vmatprep.subr.mxu0 0.0
    %2921 = vmatpush1.xpose.msra.mxu0 %v2845
    %2922 = vmatprep.subr.mxu0 0.0
    %2923 = vmatpush1.xpose.msra.mxu0 %v2848
    %2924 = vmatprep.subr.mxu0 0.0
    %2925 = vmatpush1.xpose.msra.mxu0 %v2851
    %2926 = vmatprep.subr.mxu0 0.0
    %2927 = vmatpush1.xpose.msra.mxu0 %v2854
    %2928 = vmatprep.subr.mxu0 0.0
    %2929 = vmatpush1.xpose.msra.mxu0 %v2857
    %2930 = vmatprep.subr.mxu0 0.0
    %2931 = vmatpush1.xpose.msra.mxu0 %v2860
    %2932 = vmatprep.subr.mxu0 0.0
    %2933 = vmatpush1.xpose.msra.mxu0 %v2863
    %2934 = vmatprep.subr.mxu0 0.0
    %2935 = vmatpush1.xpose.msra.mxu0 %v2866
    %2936 = vmatprep.subr.mxu0 0.0
    %2937 = vmatpush1.xpose.msra.mxu0 %v2869
    %2938 = vmatprep.subr.mxu0 0.0
    %2939 = vmatpush1.xpose.msra.mxu0 %v2872
    %2940 = vmatprep.subr.mxu0 0.0
    %2941 = vmatpush1.xpose.msra.mxu0 %v2875
    %2942 = vmatprep.subr.mxu0 0.0
    %2943 = vmatpush1.xpose.msra.mxu0 %v2878
    %2944 = vmatprep.mubr.f32.mxu0 0.0
    %2945 = vmatmul.mubr.f32.gmra.mrb[0].mxu0 %v2782
    %v2946 = vpop.f32.mrb[0].mxu0
    %v2947 = vadd.f32 0.0, %v2946
    %v2948 = vpop.f32.mrb[0].mxu0
    %v2949 = vadd.f32 0.0, %v2948
    %2950 = vdwg.mxu0
    %v2951 = vld [vmem:[#allocation2] sm:$0x1]
    %2953 = vset.pattern.permute.xlu0 0
    %2954 = vperm.xlu0 %2953, %v2951
    %v2955 = vpop.permute.xlu0 %2954
    %v2957 = vlaneseq
    %v2958 = vshrl.u32 %v2957, 7
    %v2959 = vsub.s32 0, %v2958
    %v2960 = vrot.slane %v2955, %v2959
    %v2961 = vadd.f32 %v2947, %v2960
    %v2962 = vadd.f32 %v2949, %v2960
    %v2965 = vcombine.low %v2961, %v2962
    %v2967 = vunpack.c.l.s4 1966171168
    %v2968 = vunpack.c.0.s8 %v2967
    %v2969 = vlaneseq
    %v2970 = vshrl.u32 %v2969, 7
    %v2971 = vsub.s32 %v2968, %v2970
    %v2972 = vrot.slane %v2965, %v2971
    %v2974 = vunpack.c.l.s4 1966171168
    %v2975 = vunpack.c.0.s8 %v2974
    %v2976 = vlaneseq
    %v2977 = vshrl.u32 %v2976, 7
    %v2978 = vsub.s32 %v2975, %v2977
    %v2979 = vrot.slane %v2972, %v2978
    %v2981 = vlaneseq
    %vm2982 = vcmp.ge.s32.totalorder %v2981, 0
    %vm2983 = vcmp.lt.s32.totalorder %v2981, 256
    %vm2984 = vmand %vm2982, %vm2983
    %2985 = vst.msk [vmem:[#allocation3] sm:$0x3] %vm2984, %v2979
    // Predicated region
    $region46: #{autoregressive_link_predictor_forward.1} parent=1 // pred_check
      _
    $region47: #{autoregressive_link_predictor_forward.1} parent=1 // pred_check_branch
      %2987 = sbr.rel (0) target = $region49
    $region48: #{autoregressive_link_predictor_forward.1} parent=1 // pred_region
      %s2989 = ssub.s32 32, 32
      %2990 = vsyncadd [#allocation4], %s2989
      %s2992 = sshll.u32 [#allocation3], 4
      %s2993 = int_to_ptr.vmem [resolvable:$true] %s2992
      %2995 = dma.vmem_to_hbm [thread:$0]  %s2993, 32, %s11, [#allocation4]
    $region49: #{autoregressive_link_predictor_forward.1} parent=1 // pred_fallthru
      _
    // Predicated region
    $region50: #{autoregressive_link_predictor_forward.1} parent=1 // pred_check
      _
    $region51: #{autoregressive_link_predictor_forward.1} parent=1 // pred_check_branch
      %2997 = sbr.rel (0) target = $region53
    $region52: #{autoregressive_link_predictor_forward.1} parent=1 // pred_region
      %2998 = dma.done [#allocation4], 32
    $region53: #{autoregressive_link_predictor_forward.1} parent=1 // pred_fallthru
      _
    %2999 = vsyncpa [#allocation4], 1

</llo_original>
